<compile_context>
chip_gen: v5e
topology: v5e:2x2
jax: 0.10.0
libtpu: 0.0.40
codegen_flags: <defaults>
</compile_context>

<pallas_src>
import functools

import jax
import jax.numpy as jnp
from jax.experimental import pallas as pl
from jax.experimental.pallas import tpu as pltpu


# ---------------------------------------------------------------------------
# Stage 1: per-graph encoder (fc1 -> conv1 -> conv2 -> ReLU), grid=(G,)
# ---------------------------------------------------------------------------
def _encoder_kernel(x_ref, a_ref, f1w_ref, f1b_ref, c1w_ref, c1b_ref,
                    c2w_ref, c2b_ref, pre_ref, enc_ref):
    x = x_ref[0]                     # (N, F)
    a = a_ref[0]                     # (N, N)  normalized adjacency
    # fc1
    h = jnp.dot(x, f1w_ref[0], preferred_element_type=jnp.float32) + f1b_ref[0]
    pre_ref[0] = h
    # conv1: A_hat @ (h @ W) + b
    h = jnp.dot(a, jnp.dot(h, c1w_ref[0], preferred_element_type=jnp.float32),
                preferred_element_type=jnp.float32) + c1b_ref[0]
    # conv2 followed by ReLU (fused)
    h = jnp.dot(a, jnp.dot(h, c2w_ref[0], preferred_element_type=jnp.float32),
                preferred_element_type=jnp.float32) + c2b_ref[0]
    enc_ref[0] = jnp.maximum(h, 0.0)


def encoder_stage(xs, a_hats, f1w, f1b, c1w, c1b, c2w, c2b):
    G, N, F = xs.shape
    H = f1w.shape[-1]
    g3 = lambda g: (g, 0, 0)
    return pl.pallas_call(
        _encoder_kernel,
        grid=(G,),
        in_specs=[
            pl.BlockSpec((1, N, F), g3),
            pl.BlockSpec((1, N, N), g3),
            pl.BlockSpec((1, F, H), g3),
            pl.BlockSpec((1, 1, H), g3),
            pl.BlockSpec((1, H, H), g3),
            pl.BlockSpec((1, 1, H), g3),
            pl.BlockSpec((1, H, H), g3),
            pl.BlockSpec((1, 1, H), g3),
        ],
        out_specs=(
            pl.BlockSpec((1, N, H), g3),
            pl.BlockSpec((1, N, H), g3),
        ),
        out_shape=(
            jax.ShapeDtypeStruct((G, N, H), jnp.float32),   # pre_feat
            jax.ShapeDtypeStruct((G, N, H), jnp.float32),   # encoder_H
        ),
        compiler_params=pltpu.CompilerParams(
            dimension_semantics=("parallel",)),
    )(xs, a_hats, f1w, f1b, c1w, c1b, c2w, c2b)


# ---------------------------------------------------------------------------
# Stage 2: graph combination + dconv1/dconv2 + fin_feat + fc2 softmax,
#          fully fused into one kernel (sequential chain across graphs).
# ---------------------------------------------------------------------------
def _combine_kernel(a_ref, enc_ref, d1w_ref, d1b_ref, d2w_ref, d2b_ref,
                    f2w_ref, f2b_ref, h_all_ref, fin_ref, loss_ref, *,
                    num_graphs):
    G = num_graphs
    # Live per-graph features, mutated in sequence exactly like the torch list.
    h = [enc_ref[i] for i in range(G)]
    for i in range(G):
        for j in range(G):
            if j != i:
                h[i] = h[i] + h[j]
        # torch reuses `j` after the inner loop -> always index G-1 (which at
        # i == G-1 is the just-summed value, giving an all-zero feature map).
        h[i] = h[G - 1] - h[i]
        a = a_ref[i]
        h[i] = jnp.dot(
            a, jnp.dot(h[i], d1w_ref[i], preferred_element_type=jnp.float32),
            preferred_element_type=jnp.float32) + d1b_ref[i]
        h[i] = jnp.dot(
            a, jnp.dot(h[i], d2w_ref[i], preferred_element_type=jnp.float32),
            preferred_element_type=jnp.float32) + d2b_ref[i]
        h_all_ref[i] = h[i]

    fin = h[0]
    for k in range(1, G - 1):        # excludes the last graph, as in torch
        fin = fin + h[k]
    fin_ref[...] = fin

    # fc2 + softmax (F.softmax with no dim -> dim=1 for a 2D input)
    logits = (jnp.dot(fin, f2w_ref[...], preferred_element_type=jnp.float32)
              + f2b_ref[...])
    m = jnp.max(logits, axis=-1, keepdims=True)
    e = jnp.exp(logits - m)
    denom = jnp.sum(e, axis=-1, keepdims=True)
    loss_ref[...] = e * pl.reciprocal(denom, approx=True)


def combine_stage(a_hats, enc, d1w, d1b, d2w, d2b, f2w, f2b):
    G, N, H = enc.shape
    F_out = f2w.shape[-1]

    def full(shape):
        return pl.BlockSpec(shape, lambda: (0,) * len(shape))

    kern = functools.partial(_combine_kernel, num_graphs=G)
    return pl.pallas_call(
        kern,
        in_specs=[
            full((G, N, N)), full((G, N, H)),
            full((G, H, H)), full((G, 1, H)),
            full((G, H, H)), full((G, 1, H)),
            full((H, F_out)), full((1, F_out)),
        ],
        out_specs=(
            full((G, N, H)), full((N, H)), full((N, F_out)),
        ),
        out_shape=(
            jax.ShapeDtypeStruct((G, N, H), jnp.float32),   # h_1_all
            jax.ShapeDtypeStruct((N, H), jnp.float32),      # fin_feat
            jax.ShapeDtypeStruct((N, F_out), jnp.float32),  # loss_embedding
        ),
    )(a_hats, enc, d1w, d1b, d2w, d2b, f2w, f2b)


# ---------------------------------------------------------------------------
# Forward pass (mirrors Net.forward exactly, including the post-loop `j`
# aliasing quirk and the in-place mutation of h_1_all)
# ---------------------------------------------------------------------------
def net_forward(xs, a_hats, params):
    pre_feat, encoder_H = encoder_stage(
        xs, a_hats,
        params["fc1_w"], params["fc1_b"],
        params["conv1_w"], params["conv1_b"],
        params["conv2_w"], params["conv2_b"])
    h_1_all, fin_feat, loss_embedding = combine_stage(
        a_hats, encoder_H,
        params["dconv1_w"], params["dconv1_b"],
        params["dconv2_w"], params["dconv2_b"],
        params["fc2_w"], params["fc2_b"])
    # Stacked (G, N, H) arrays stand in for the torch lists of per-graph tensors.
    return pre_feat, encoder_H, h_1_all, fin_feat, loss_embedding


# ---------------------------------------------------------------------------
# Deterministic setup helpers (plain JAX glue)
# ---------------------------------------------------------------------------
def normalized_adjacency(src, dst, num_nodes):
    a = jnp.zeros((num_nodes, num_nodes), jnp.float32)
    a = a.at[src, dst].set(1.0)
    a = a.at[dst, src].set(1.0)                       # undirected
    a = a + jnp.eye(num_nodes, dtype=jnp.float32)     # self-loops
    deg = a.sum(axis=1)
    d_inv_sqrt = 1.0 / jnp.sqrt(deg)
    return a * d_inv_sqrt[:, None] * d_inv_sqrt[None, :]


def init_linear(key, f_in, f_out):
    kw, kb = jax.random.split(key)
    bound = 1.0 / jnp.sqrt(jnp.float32(f_in))
    w = jax.random.uniform(kw, (f_in, f_out), jnp.float32, -bound, bound)
    b = jax.random.uniform(kb, (1, f_out), jnp.float32, -bound, bound)
    return w, b


if __name__ == "__main__":
    NUM_GRAPHS = 3
    NUM_NODES = 8
    NUM_FEATURES = 16
    HIDDEN = 128

    key = jax.random.PRNGKey(0)

    # node features and graph structure for each graph (deterministic rings)
    xs_list, a_list = [], []
    for g in range(NUM_GRAPHS):
        key, kx = jax.random.split(key)
        xs_list.append(jax.random.normal(kx, (NUM_NODES, NUM_FEATURES),
                                         jnp.float32))
        src = jnp.arange(NUM_NODES)
        dst = (src + 1 + g) % NUM_NODES
        a_list.append(normalized_adjacency(src, dst, NUM_NODES))
    xs = jnp.stack(xs_list)        # (G, N, F)
    a_hats = jnp.stack(a_list)     # (G, N, N)

    # parameters (deterministic, synthetic), stacked along the graph axis
    params = {
        "fc1_w": [], "fc1_b": [],
        "conv1_w": [], "conv1_b": [],
        "conv2_w": [], "conv2_b": [],
        "dconv1_w": [], "dconv1_b": [],
        "dconv2_w": [], "dconv2_b": [],
    }
    for g in range(NUM_GRAPHS):
        key, k1, k2, k3, k4, k5 = jax.random.split(key, 6)
        w, b = init_linear(k1, NUM_FEATURES, HIDDEN)
        params["fc1_w"].append(w); params["fc1_b"].append(b)
        for name, kk in (("conv1", k2), ("conv2", k3),
                         ("dconv1", k4), ("dconv2", k5)):
            w, b = init_linear(kk, HIDDEN, HIDDEN)
            params[name + "_w"].append(w)
            params[name + "_b"].append(b)
    for name in ("fc1", "conv1", "conv2", "dconv1", "dconv2"):
        params[name + "_w"] = jnp.stack(params[name + "_w"])   # (G, Fin, Fout)
        params[name + "_b"] = jnp.stack(params[name + "_b"])   # (G, 1, Fout)
    key, kfc2 = jax.random.split(key)
    params["fc2_w"], params["fc2_b"] = init_linear(kfc2, HIDDEN, NUM_FEATURES)

    fwd = jax.jit(net_forward)
    pre_feat, encoder_H, h_1_all, fin_feat, loss_embedding = fwd(
        xs, a_hats, params)
    jax.block_until_ready(loss_embedding)
    jax.block_until_ready(fin_feat)

    # light sanity checks
    assert pre_feat.shape == (NUM_GRAPHS, NUM_NODES, HIDDEN)
    assert encoder_H.shape == (NUM_GRAPHS, NUM_NODES, HIDDEN)
    assert h_1_all.shape == (NUM_GRAPHS, NUM_NODES, HIDDEN)
    assert fin_feat.shape == (NUM_NODES, HIDDEN)
    assert loss_embedding.shape == (NUM_NODES, NUM_FEATURES)
    assert bool(jnp.all(jnp.isfinite(fin_feat)))
    # approx reciprocal in the softmax -> allow a slightly looser tolerance
    assert jnp.allclose(loss_embedding.sum(axis=-1), 1.0, atol=5e-3)

    print("KERNEL_OK")
</pallas_src>

<mosaic_0001>
module attributes {stable_mosaic.version = 11 : i64} {
  func.func @_encoder_kernel(%arg0: i32, %arg1: memref<1x8x16xf32, #tpu.memory_space<vmem>>, %arg2: memref<1x8x8xf32, #tpu.memory_space<vmem>>, %arg3: memref<1x16x128xf32, #tpu.memory_space<vmem>>, %arg4: memref<1x1x128xf32, #tpu.memory_space<vmem>>, %arg5: memref<1x128x128xf32, #tpu.memory_space<vmem>>, %arg6: memref<1x1x128xf32, #tpu.memory_space<vmem>>, %arg7: memref<1x128x128xf32, #tpu.memory_space<vmem>>, %arg8: memref<1x1x128xf32, #tpu.memory_space<vmem>>, %arg9: memref<1x8x128xf32, #tpu.memory_space<vmem>>, %arg10: memref<1x8x128xf32, #tpu.memory_space<vmem>>) attributes {dimension_semantics = [#tpu.dimension_semantics<parallel>], iteration_bounds = array<i64: 3>, scalar_prefetch = 0 : i64, scratch_operands = 0 : i64, tpu.core_type = #tpu.core_type<tc>, window_params = [{transform_indices = @transform_0, window_bounds = array<i64: 1, 8, 16>}, {transform_indices = @transform_1, window_bounds = array<i64: 1, 8, 8>}, {transform_indices = @transform_2, window_bounds = array<i64: 1, 16, 128>}, {transform_indices = @transform_3, window_bounds = array<i64: 1, 1, 128>}, {transform_indices = @transform_4, window_bounds = array<i64: 1, 128, 128>}, {transform_indices = @transform_5, window_bounds = array<i64: 1, 1, 128>}, {transform_indices = @transform_6, window_bounds = array<i64: 1, 128, 128>}, {transform_indices = @transform_7, window_bounds = array<i64: 1, 1, 128>}, {transform_indices = @transform_8, window_bounds = array<i64: 1, 8, 128>}, {transform_indices = @transform_9, window_bounds = array<i64: 1, 8, 128>}]} {
    %c0 = arith.constant 0 : index
    %c0_0 = arith.constant 0 : index
    %c0_1 = arith.constant 0 : index
    %0 = vector.load %arg1[%c0, %c0_0, %c0_1] : memref<1x8x16xf32, #tpu.memory_space<vmem>>, vector<1x8x16xf32>
    %1 = vector.shape_cast %0 : vector<1x8x16xf32> to vector<8x16xf32>
    %c0_2 = arith.constant 0 : index
    %c0_3 = arith.constant 0 : index
    %c0_4 = arith.constant 0 : index
    %2 = vector.load %arg2[%c0_2, %c0_3, %c0_4] : memref<1x8x8xf32, #tpu.memory_space<vmem>>, vector<1x8x8xf32>
    %3 = vector.shape_cast %2 : vector<1x8x8xf32> to vector<8x8xf32>
    %c0_5 = arith.constant 0 : index
    %c0_6 = arith.constant 0 : index
    %c0_7 = arith.constant 0 : index
    %4 = vector.load %arg3[%c0_5, %c0_6, %c0_7] : memref<1x16x128xf32, #tpu.memory_space<vmem>>, vector<1x16x128xf32>
    %5 = vector.shape_cast %4 : vector<1x16x128xf32> to vector<16x128xf32>
    %cst = arith.constant dense<0.000000e+00> : vector<8x128xf32>
    %6 = tpu.matmul %1, %5, %cst {dimension_numbers = #tpu.dot_dimension_numbers<[1], [0], [0], [1], [0, 0, 1, 1], [], []>} : vector<8x16xf32>, vector<16x128xf32>, vector<8x128xf32> -> vector<8x128xf32>
    %c0_8 = arith.constant 0 : index
    %c0_9 = arith.constant 0 : index
    %c0_10 = arith.constant 0 : index
    %7 = vector.load %arg4[%c0_8, %c0_9, %c0_10] : memref<1x1x128xf32, #tpu.memory_space<vmem>>, vector<1x1x128xf32>
    %8 = vector.shape_cast %7 : vector<1x1x128xf32> to vector<1x128xf32>
    %9 = vector.broadcast %8 : vector<1x128xf32> to vector<8x128xf32>
    %10 = arith.addf %6, %9 : vector<8x128xf32>
    %c0_11 = arith.constant 0 : index
    %c0_12 = arith.constant 0 : index
    %c0_13 = arith.constant 0 : index
    %11 = vector.load %arg9[%c0_11, %c0_12, %c0_13] : memref<1x8x128xf32, #tpu.memory_space<vmem>>, vector<1x8x128xf32>
    %12 = vector.shape_cast %11 : vector<1x8x128xf32> to vector<8x128xf32>
    %13 = vector.shape_cast %10 : vector<8x128xf32> to vector<1x8x128xf32>
    tpu.vector_store %arg9[%c0_11, %c0_12, %c0_13], %13 {strides = array<i32>} : memref<1x8x128xf32, #tpu.memory_space<vmem>>, vector<1x8x128xf32>,
    %c0_14 = arith.constant 0 : index
    %c0_15 = arith.constant 0 : index
    %c0_16 = arith.constant 0 : index
    %14 = vector.load %arg5[%c0_14, %c0_15, %c0_16] : memref<1x128x128xf32, #tpu.memory_space<vmem>>, vector<1x128x128xf32>
    %15 = vector.shape_cast %14 : vector<1x128x128xf32> to vector<128x128xf32>
    %cst_17 = arith.constant dense<0.000000e+00> : vector<8x128xf32>
    %16 = tpu.matmul %10, %15, %cst_17 {dimension_numbers = #tpu.dot_dimension_numbers<[1], [0], [0], [1], [0, 0, 1, 1], [], []>} : vector<8x128xf32>, vector<128x128xf32>, vector<8x128xf32> -> vector<8x128xf32>
    %cst_18 = arith.constant dense<0.000000e+00> : vector<8x128xf32>
    %17 = tpu.matmul %3, %16, %cst_18 {dimension_numbers = #tpu.dot_dimension_numbers<[1], [0], [0], [1], [0, 0, 1, 1], [], []>} : vector<8x8xf32>, vector<8x128xf32>, vector<8x128xf32> -> vector<8x128xf32>
    %c0_19 = arith.constant 0 : index
    %c0_20 = arith.constant 0 : index
    %c0_21 = arith.constant 0 : index
    %18 = vector.load %arg6[%c0_19, %c0_20, %c0_21] : memref<1x1x128xf32, #tpu.memory_space<vmem>>, vector<1x1x128xf32>
    %19 = vector.shape_cast %18 : vector<1x1x128xf32> to vector<1x128xf32>
    %20 = vector.broadcast %19 : vector<1x128xf32> to vector<8x128xf32>
    %21 = arith.addf %17, %20 : vector<8x128xf32>
    %c0_22 = arith.constant 0 : index
    %c0_23 = arith.constant 0 : index
    %c0_24 = arith.constant 0 : index
    %22 = vector.load %arg7[%c0_22, %c0_23, %c0_24] : memref<1x128x128xf32, #tpu.memory_space<vmem>>, vector<1x128x128xf32>
    %23 = vector.shape_cast %22 : vector<1x128x128xf32> to vector<128x128xf32>
    %cst_25 = arith.constant dense<0.000000e+00> : vector<8x128xf32>
    %24 = tpu.matmul %21, %23, %cst_25 {dimension_numbers = #tpu.dot_dimension_numbers<[1], [0], [0], [1], [0, 0, 1, 1], [], []>} : vector<8x128xf32>, vector<128x128xf32>, vector<8x128xf32> -> vector<8x128xf32>
    %cst_26 = arith.constant dense<0.000000e+00> : vector<8x128xf32>
    %25 = tpu.matmul %3, %24, %cst_26 {dimension_numbers = #tpu.dot_dimension_numbers<[1], [0], [0], [1], [0, 0, 1, 1], [], []>} : vector<8x8xf32>, vector<8x128xf32>, vector<8x128xf32> -> vector<8x128xf32>
    %c0_27 = arith.constant 0 : index
    %c0_28 = arith.constant 0 : index
    %c0_29 = arith.constant 0 : index
    %26 = vector.load %arg8[%c0_27, %c0_28, %c0_29] : memref<1x1x128xf32, #tpu.memory_space<vmem>>, vector<1x1x128xf32>
    %27 = vector.shape_cast %26 : vector<1x1x128xf32> to vector<1x128xf32>
    %28 = vector.broadcast %27 : vector<1x128xf32> to vector<8x128xf32>
    %29 = arith.addf %25, %28 : vector<8x128xf32>
    %cst_30 = arith.constant 0.000000e+00 : f32
    %30 = vector.broadcast %cst_30 : f32 to vector<8x128xf32>
    %31 = arith.maximumf %29, %30 : vector<8x128xf32>
    %c0_31 = arith.constant 0 : index
    %c0_32 = arith.constant 0 : index
    %c0_33 = arith.constant 0 : index
    %32 = vector.load %arg10[%c0_31, %c0_32, %c0_33] : memref<1x8x128xf32, #tpu.memory_space<vmem>>, vector<1x8x128xf32>
    %33 = vector.shape_cast %32 : vector<1x8x128xf32> to vector<8x128xf32>
    %34 = vector.shape_cast %31 : vector<8x128xf32> to vector<1x8x128xf32>
    tpu.vector_store %arg10[%c0_31, %c0_32, %c0_33], %34 {strides = array<i32>} : memref<1x8x128xf32, #tpu.memory_space<vmem>>, vector<1x8x128xf32>,
    return
  }
  func.func @transform_0(%arg0: i32) -> (i32, i32, i32) {
    %c0_i32 = arith.constant 0 : i32
    %c0_i32_0 = arith.constant 0 : i32
    %c0_i32_1 = arith.constant 0 : i32
    return %arg0, %c0_i32, %c0_i32_0 : i32, i32, i32
  }
  func.func @transform_1(%arg0: i32) -> (i32, i32, i32) {
    %c0_i32 = arith.constant 0 : i32
    %c0_i32_0 = arith.constant 0 : i32
    %c0_i32_1 = arith.constant 0 : i32
    return %arg0, %c0_i32, %c0_i32_0 : i32, i32, i32
  }
  func.func @transform_2(%arg0: i32) -> (i32, i32, i32) {
    %c0_i32 = arith.constant 0 : i32
    %c0_i32_0 = arith.constant 0 : i32
    %c0_i32_1 = arith.constant 0 : i32
    return %arg0, %c0_i32, %c0_i32_0 : i32, i32, i32
  }
  func.func @transform_3(%arg0: i32) -> (i32, i32, i32) {
    %c0_i32 = arith.constant 0 : i32
    %c0_i32_0 = arith.constant 0 : i32
    %c0_i32_1 = arith.constant 0 : i32
    return %arg0, %c0_i32, %c0_i32_0 : i32, i32, i32
  }
  func.func @transform_4(%arg0: i32) -> (i32, i32, i32) {
    %c0_i32 = arith.constant 0 : i32
    %c0_i32_0 = arith.constant 0 : i32
    %c0_i32_1 = arith.constant 0 : i32
    return %arg0, %c0_i32, %c0_i32_0 : i32, i32, i32
  }
  func.func @transform_5(%arg0: i32) -> (i32, i32, i32) {
    %c0_i32 = arith.constant 0 : i32
    %c0_i32_0 = arith.constant 0 : i32
    %c0_i32_1 = arith.constant 0 : i32
    return %arg0, %c0_i32, %c0_i32_0 : i32, i32, i32
  }
  func.func @transform_6(%arg0: i32) -> (i32, i32, i32) {
    %c0_i32 = arith.constant 0 : i32
    %c0_i32_0 = arith.constant 0 : i32
    %c0_i32_1 = arith.constant 0 : i32
    return %arg0, %c0_i32, %c0_i32_0 : i32, i32, i32
  }
  func.func @transform_7(%arg0: i32) -> (i32, i32, i32) {
    %c0_i32 = arith.constant 0 : i32
    %c0_i32_0 = arith.constant 0 : i32
    %c0_i32_1 = arith.constant 0 : i32
    return %arg0, %c0_i32, %c0_i32_0 : i32, i32, i32
  }
  func.func @transform_8(%arg0: i32) -> (i32, i32, i32) {
    %c0_i32 = arith.constant 0 : i32
    %c0_i32_0 = arith.constant 0 : i32
    %c0_i32_1 = arith.constant 0 : i32
    return %arg0, %c0_i32, %c0_i32_0 : i32, i32, i32
  }
  func.func @transform_9(%arg0: i32) -> (i32, i32, i32) {
    %c0_i32 = arith.constant 0 : i32
    %c0_i32_0 = arith.constant 0 : i32
    %c0_i32_1 = arith.constant 0 : i32
    return %arg0, %c0_i32, %c0_i32_0 : i32, i32, i32
  }
}

module attributes {stable_mosaic.version = 11 : i64} {
  func.func @_combine_kernel(%arg0: memref<3x8x8xf32, #tpu.memory_space<vmem>>, %arg1: memref<3x8x128xf32, #tpu.memory_space<vmem>>, %arg2: memref<3x128x128xf32, #tpu.memory_space<vmem>>, %arg3: memref<3x1x128xf32, #tpu.memory_space<vmem>>, %arg4: memref<3x128x128xf32, #tpu.memory_space<vmem>>, %arg5: memref<3x1x128xf32, #tpu.memory_space<vmem>>, %arg6: memref<128x16xf32, #tpu.memory_space<vmem>>, %arg7: memref<1x16xf32, #tpu.memory_space<vmem>>, %arg8: memref<3x8x128xf32, #tpu.memory_space<vmem>>, %arg9: memref<8x128xf32, #tpu.memory_space<vmem>>, %arg10: memref<8x16xf32, #tpu.memory_space<vmem>>) attributes {dimension_semantics = [], scalar_prefetch = 0 : i64, scratch_operands = 0 : i64, tpu.core_type = #tpu.core_type<tc>} {
    %c0 = arith.constant 0 : index
    %c0_0 = arith.constant 0 : index
    %c0_1 = arith.constant 0 : index
    %0 = vector.load %arg1[%c0, %c0_0, %c0_1] : memref<3x8x128xf32, #tpu.memory_space<vmem>>, vector<1x8x128xf32>
    %1 = vector.shape_cast %0 : vector<1x8x128xf32> to vector<8x128xf32>
    %c1 = arith.constant 1 : index
    %c0_2 = arith.constant 0 : index
    %c0_3 = arith.constant 0 : index
    %2 = vector.load %arg1[%c1, %c0_2, %c0_3] : memref<3x8x128xf32, #tpu.memory_space<vmem>>, vector<1x8x128xf32>
    %3 = vector.shape_cast %2 : vector<1x8x128xf32> to vector<8x128xf32>
    %c2 = arith.constant 2 : index
    %c0_4 = arith.constant 0 : index
    %c0_5 = arith.constant 0 : index
    %4 = vector.load %arg1[%c2, %c0_4, %c0_5] : memref<3x8x128xf32, #tpu.memory_space<vmem>>, vector<1x8x128xf32>
    %5 = vector.shape_cast %4 : vector<1x8x128xf32> to vector<8x128xf32>
    %6 = arith.addf %1, %3 : vector<8x128xf32>
    %7 = arith.addf %6, %5 : vector<8x128xf32>
    %8 = arith.subf %5, %7 : vector<8x128xf32>
    %c0_6 = arith.constant 0 : index
    %c0_7 = arith.constant 0 : index
    %c0_8 = arith.constant 0 : index
    %9 = vector.load %arg0[%c0_6, %c0_7, %c0_8] : memref<3x8x8xf32, #tpu.memory_space<vmem>>, vector<1x8x8xf32>
    %10 = vector.shape_cast %9 : vector<1x8x8xf32> to vector<8x8xf32>
    %c0_9 = arith.constant 0 : index
    %c0_10 = arith.constant 0 : index
    %c0_11 = arith.constant 0 : index
    %11 = vector.load %arg2[%c0_9, %c0_10, %c0_11] : memref<3x128x128xf32, #tpu.memory_space<vmem>>, vector<1x128x128xf32>
    %12 = vector.shape_cast %11 : vector<1x128x128xf32> to vector<128x128xf32>
    %cst = arith.constant dense<0.000000e+00> : vector<8x128xf32>
    %13 = tpu.matmul %8, %12, %cst {dimension_numbers = #tpu.dot_dimension_numbers<[1], [0], [0], [1], [0, 0, 1, 1], [], []>} : vector<8x128xf32>, vector<128x128xf32>, vector<8x128xf32> -> vector<8x128xf32>
    %cst_12 = arith.constant dense<0.000000e+00> : vector<8x128xf32>
    %14 = tpu.matmul %10, %13, %cst_12 {dimension_numbers = #tpu.dot_dimension_numbers<[1], [0], [0], [1], [0, 0, 1, 1], [], []>} : vector<8x8xf32>, vector<8x128xf32>, vector<8x128xf32> -> vector<8x128xf32>
    %c0_13 = arith.constant 0 : index
    %c0_14 = arith.constant 0 : index
    %c0_15 = arith.constant 0 : index
    %15 = vector.load %arg3[%c0_13, %c0_14, %c0_15] : memref<3x1x128xf32, #tpu.memory_space<vmem>>, vector<1x1x128xf32>
    %16 = vector.shape_cast %15 : vector<1x1x128xf32> to vector<1x128xf32>
    %17 = vector.broadcast %16 : vector<1x128xf32> to vector<8x128xf32>
    %18 = arith.addf %14, %17 : vector<8x128xf32>
    %c0_16 = arith.constant 0 : index
    %c0_17 = arith.constant 0 : index
    %c0_18 = arith.constant 0 : index
    %19 = vector.load %arg4[%c0_16, %c0_17, %c0_18] : memref<3x128x128xf32, #tpu.memory_space<vmem>>, vector<1x128x128xf32>
    %20 = vector.shape_cast %19 : vector<1x128x128xf32> to vector<128x128xf32>
    %cst_19 = arith.constant dense<0.000000e+00> : vector<8x128xf32>
    %21 = tpu.matmul %18, %20, %cst_19 {dimension_numbers = #tpu.dot_dimension_numbers<[1], [0], [0], [1], [0, 0, 1, 1], [], []>} : vector<8x128xf32>, vector<128x128xf32>, vector<8x128xf32> -> vector<8x128xf32>
    %cst_20 = arith.constant dense<0.000000e+00> : vector<8x128xf32>
    %22 = tpu.matmul %10, %21, %cst_20 {dimension_numbers = #tpu.dot_dimension_numbers<[1], [0], [0], [1], [0, 0, 1, 1], [], []>} : vector<8x8xf32>, vector<8x128xf32>, vector<8x128xf32> -> vector<8x128xf32>
    %c0_21 = arith.constant 0 : index
    %c0_22 = arith.constant 0 : index
    %c0_23 = arith.constant 0 : index
    %23 = vector.load %arg5[%c0_21, %c0_22, %c0_23] : memref<3x1x128xf32, #tpu.memory_space<vmem>>, vector<1x1x128xf32>
    %24 = vector.shape_cast %23 : vector<1x1x128xf32> to vector<1x128xf32>
    %25 = vector.broadcast %24 : vector<1x128xf32> to vector<8x128xf32>
    %26 = arith.addf %22, %25 : vector<8x128xf32>
    %c0_24 = arith.constant 0 : index
    %c0_25 = arith.constant 0 : index
    %c0_26 = arith.constant 0 : index
    %27 = vector.load %arg8[%c0_24, %c0_25, %c0_26] : memref<3x8x128xf32, #tpu.memory_space<vmem>>, vector<1x8x128xf32>
    %28 = vector.shape_cast %27 : vector<1x8x128xf32> to vector<8x128xf32>
    %29 = vector.shape_cast %26 : vector<8x128xf32> to vector<1x8x128xf32>
    tpu.vector_store %arg8[%c0_24, %c0_25, %c0_26], %29 {strides = array<i32>} : memref<3x8x128xf32, #tpu.memory_space<vmem>>, vector<1x8x128xf32>,
    %30 = arith.addf %3, %26 : vector<8x128xf32>
    %31 = arith.addf %30, %5 : vector<8x128xf32>
    %32 = arith.subf %5, %31 : vector<8x128xf32>
    %c1_27 = arith.constant 1 : index
    %c0_28 = arith.constant 0 : index
    %c0_29 = arith.constant 0 : index
    %33 = vector.load %arg0[%c1_27, %c0_28, %c0_29] : memref<3x8x8xf32, #tpu.memory_space<vmem>>, vector<1x8x8xf32>
    %34 = vector.shape_cast %33 : vector<1x8x8xf32> to vector<8x8xf32>
    %c1_30 = arith.constant 1 : index
    %c0_31 = arith.constant 0 : index
    %c0_32 = arith.constant 0 : index
    %35 = vector.load %arg2[%c1_30, %c0_31, %c0_32] : memref<3x128x128xf32, #tpu.memory_space<vmem>>, vector<1x128x128xf32>
    %36 = vector.shape_cast %35 : vector<1x128x128xf32> to vector<128x128xf32>
    %cst_33 = arith.constant dense<0.000000e+00> : vector<8x128xf32>
    %37 = tpu.matmul %32, %36, %cst_33 {dimension_numbers = #tpu.dot_dimension_numbers<[1], [0], [0], [1], [0, 0, 1, 1], [], []>} : vector<8x128xf32>, vector<128x128xf32>, vector<8x128xf32> -> vector<8x128xf32>
    %cst_34 = arith.constant dense<0.000000e+00> : vector<8x128xf32>
    %38 = tpu.matmul %34, %37, %cst_34 {dimension_numbers = #tpu.dot_dimension_numbers<[1], [0], [0], [1], [0, 0, 1, 1], [], []>} : vector<8x8xf32>, vector<8x128xf32>, vector<8x128xf32> -> vector<8x128xf32>
    %c1_35 = arith.constant 1 : index
    %c0_36 = arith.constant 0 : index
    %c0_37 = arith.constant 0 : index
    %39 = vector.load %arg3[%c1_35, %c0_36, %c0_37] : memref<3x1x128xf32, #tpu.memory_space<vmem>>, vector<1x1x128xf32>
    %40 = vector.shape_cast %39 : vector<1x1x128xf32> to vector<1x128xf32>
    %41 = vector.broadcast %40 : vector<1x128xf32> to vector<8x128xf32>
    %42 = arith.addf %38, %41 : vector<8x128xf32>
    %c1_38 = arith.constant 1 : index
    %c0_39 = arith.constant 0 : index
    %c0_40 = arith.constant 0 : index
    %43 = vector.load %arg4[%c1_38, %c0_39, %c0_40] : memref<3x128x128xf32, #tpu.memory_space<vmem>>, vector<1x128x128xf32>
    %44 = vector.shape_cast %43 : vector<1x128x128xf32> to vector<128x128xf32>
    %cst_41 = arith.constant dense<0.000000e+00> : vector<8x128xf32>
    %45 = tpu.matmul %42, %44, %cst_41 {dimension_numbers = #tpu.dot_dimension_numbers<[1], [0], [0], [1], [0, 0, 1, 1], [], []>} : vector<8x128xf32>, vector<128x128xf32>, vector<8x128xf32> -> vector<8x128xf32>
    %cst_42 = arith.constant dense<0.000000e+00> : vector<8x128xf32>
    %46 = tpu.matmul %34, %45, %cst_42 {dimension_numbers = #tpu.dot_dimension_numbers<[1], [0], [0], [1], [0, 0, 1, 1], [], []>} : vector<8x8xf32>, vector<8x128xf32>, vector<8x128xf32> -> vector<8x128xf32>
    %c1_43 = arith.constant 1 : index
    %c0_44 = arith.constant 0 : index
    %c0_45 = arith.constant 0 : index
    %47 = vector.load %arg5[%c1_43, %c0_44, %c0_45] : memref<3x1x128xf32, #tpu.memory_space<vmem>>, vector<1x1x128xf32>
    %48 = vector.shape_cast %47 : vector<1x1x128xf32> to vector<1x128xf32>
    %49 = vector.broadcast %48 : vector<1x128xf32> to vector<8x128xf32>
    %50 = arith.addf %46, %49 : vector<8x128xf32>
    %c1_46 = arith.constant 1 : index
    %c0_47 = arith.constant 0 : index
    %c0_48 = arith.constant 0 : index
    %51 = vector.load %arg8[%c1_46, %c0_47, %c0_48] : memref<3x8x128xf32, #tpu.memory_space<vmem>>, vector<1x8x128xf32>
    %52 = vector.shape_cast %51 : vector<1x8x128xf32> to vector<8x128xf32>
    %53 = vector.shape_cast %50 : vector<8x128xf32> to vector<1x8x128xf32>
    tpu.vector_store %arg8[%c1_46, %c0_47, %c0_48], %53 {strides = array<i32>} : memref<3x8x128xf32, #tpu.memory_space<vmem>>, vector<1x8x128xf32>,
    %54 = arith.addf %5, %26 : vector<8x128xf32>
    %55 = arith.addf %54, %50 : vector<8x128xf32>
    %56 = arith.subf %55, %55 : vector<8x128xf32>
    %c2_49 = arith.constant 2 : index
    %c0_50 = arith.constant 0 : index
    %c0_51 = arith.constant 0 : index
    %57 = vector.load %arg0[%c2_49, %c0_50, %c0_51] : memref<3x8x8xf32, #tpu.memory_space<vmem>>, vector<1x8x8xf32>
    %58 = vector.shape_cast %57 : vector<1x8x8xf32> to vector<8x8xf32>
    %c2_52 = arith.constant 2 : index
    %c0_53 = arith.constant 0 : index
    %c0_54 = arith.constant 0 : index
    %59 = vector.load %arg2[%c2_52, %c0_53, %c0_54] : memref<3x128x128xf32, #tpu.memory_space<vmem>>, vector<1x128x128xf32>
    %60 = vector.shape_cast %59 : vector<1x128x128xf32> to vector<128x128xf32>
    %cst_55 = arith.constant dense<0.000000e+00> : vector<8x128xf32>
    %61 = tpu.matmul %56, %60, %cst_55 {dimension_numbers = #tpu.dot_dimension_numbers<[1], [0], [0], [1], [0, 0, 1, 1], [], []>} : vector<8x128xf32>, vector<128x128xf32>, vector<8x128xf32> -> vector<8x128xf32>
    %cst_56 = arith.constant dense<0.000000e+00> : vector<8x128xf32>
    %62 = tpu.matmul %58, %61, %cst_56 {dimension_numbers = #tpu.dot_dimension_numbers<[1], [0], [0], [1], [0, 0, 1, 1], [], []>} : vector<8x8xf32>, vector<8x128xf32>, vector<8x128xf32> -> vector<8x128xf32>
    %c2_57 = arith.constant 2 : index
    %c0_58 = arith.constant 0 : index
    %c0_59 = arith.constant 0 : index
    %63 = vector.load %arg3[%c2_57, %c0_58, %c0_59] : memref<3x1x128xf32, #tpu.memory_space<vmem>>, vector<1x1x128xf32>
    %64 = vector.shape_cast %63 : vector<1x1x128xf32> to vector<1x128xf32>
    %65 = vector.broadcast %64 : vector<1x128xf32> to vector<8x128xf32>
    %66 = arith.addf %62, %65 : vector<8x128xf32>
    %c2_60 = arith.constant 2 : index
    %c0_61 = arith.constant 0 : index
    %c0_62 = arith.constant 0 : index
    %67 = vector.load %arg4[%c2_60, %c0_61, %c0_62] : memref<3x128x128xf32, #tpu.memory_space<vmem>>, vector<1x128x128xf32>
    %68 = vector.shape_cast %67 : vector<1x128x128xf32> to vector<128x128xf32>
    %cst_63 = arith.constant dense<0.000000e+00> : vector<8x128xf32>
    %69 = tpu.matmul %66, %68, %cst_63 {dimension_numbers = #tpu.dot_dimension_numbers<[1], [0], [0], [1], [0, 0, 1, 1], [], []>} : vector<8x128xf32>, vector<128x128xf32>, vector<8x128xf32> -> vector<8x128xf32>
    %cst_64 = arith.constant dense<0.000000e+00> : vector<8x128xf32>
    %70 = tpu.matmul %58, %69, %cst_64 {dimension_numbers = #tpu.dot_dimension_numbers<[1], [0], [0], [1], [0, 0, 1, 1], [], []>} : vector<8x8xf32>, vector<8x128xf32>, vector<8x128xf32> -> vector<8x128xf32>
    %c2_65 = arith.constant 2 : index
    %c0_66 = arith.constant 0 : index
    %c0_67 = arith.constant 0 : index
    %71 = vector.load %arg5[%c2_65, %c0_66, %c0_67] : memref<3x1x128xf32, #tpu.memory_space<vmem>>, vector<1x1x128xf32>
    %72 = vector.shape_cast %71 : vector<1x1x128xf32> to vector<1x128xf32>
    %73 = vector.broadcast %72 : vector<1x128xf32> to vector<8x128xf32>
    %74 = arith.addf %70, %73 : vector<8x128xf32>
    %c2_68 = arith.constant 2 : index
    %c0_69 = arith.constant 0 : index
    %c0_70 = arith.constant 0 : index
    %75 = vector.load %arg8[%c2_68, %c0_69, %c0_70] : memref<3x8x128xf32, #tpu.memory_space<vmem>>, vector<1x8x128xf32>
    %76 = vector.shape_cast %75 : vector<1x8x128xf32> to vector<8x128xf32>
    %77 = vector.shape_cast %74 : vector<8x128xf32> to vector<1x8x128xf32>
    tpu.vector_store %arg8[%c2_68, %c0_69, %c0_70], %77 {strides = array<i32>} : memref<3x8x128xf32, #tpu.memory_space<vmem>>, vector<1x8x128xf32>,
    %78 = arith.addf %26, %50 : vector<8x128xf32>
    %c0_71 = arith.constant 0 : index
    %c0_72 = arith.constant 0 : index
    %79 = vector.load %arg9[%c0_71, %c0_72] : memref<8x128xf32, #tpu.memory_space<vmem>>, vector<8x128xf32>
    tpu.vector_store %arg9[%c0_71, %c0_72], %78 {strides = array<i32>} : memref<8x128xf32, #tpu.memory_space<vmem>>, vector<8x128xf32>,
    %c0_73 = arith.constant 0 : index
    %c0_74 = arith.constant 0 : index
    %80 = vector.load %arg6[%c0_73, %c0_74] : memref<128x16xf32, #tpu.memory_space<vmem>>, vector<128x16xf32>
    %cst_75 = arith.constant dense<0.000000e+00> : vector<8x16xf32>
    %81 = tpu.matmul %78, %80, %cst_75 {dimension_numbers = #tpu.dot_dimension_numbers<[1], [0], [0], [1], [0, 0, 1, 1], [], []>} : vector<8x128xf32>, vector<128x16xf32>, vector<8x16xf32> -> vector<8x16xf32>
    %c0_76 = arith.constant 0 : index
    %c0_77 = arith.constant 0 : index
    %82 = vector.load %arg7[%c0_76, %c0_77] : memref<1x16xf32, #tpu.memory_space<vmem>>, vector<1x16xf32>
    %83 = vector.broadcast %82 : vector<1x16xf32> to vector<8x16xf32>
    %84 = arith.addf %81, %83 : vector<8x16xf32>
    %cst_78 = arith.constant dense<0xFF800000> : vector<8xf32>
    %85 = vector.multi_reduction <maximumf>, %84, %cst_78 [1] : vector<8x16xf32> to vector<8xf32>
    %86 = vector.shape_cast %85 : vector<8xf32> to vector<8x1xf32>
    %87 = vector.broadcast %86 : vector<8x1xf32> to vector<8x16xf32>
    %88 = arith.subf %84, %87 : vector<8x16xf32>
    %89 = math.exp %88 : vector<8x16xf32>
    %cst_79 = arith.constant dense<0.000000e+00> : vector<8xf32>
    %90 = vector.multi_reduction <add>, %89, %cst_79 [1] : vector<8x16xf32> to vector<8xf32>
    %91 = vector.shape_cast %90 : vector<8xf32> to vector<8x1xf32>
    %92 = tpu.reciprocal %91 {approx = true} : vector<8x1xf32> -> vector<8x1xf32>
    %93 = vector.broadcast %92 : vector<8x1xf32> to vector<8x16xf32>
    %94 = arith.mulf %89, %93 : vector<8x16xf32>
    %c0_80 = arith.constant 0 : index
    %c0_81 = arith.constant 0 : index
    %95 = vector.load %arg10[%c0_80, %c0_81] : memref<8x16xf32, #tpu.memory_space<vmem>>, vector<8x16xf32>
    tpu.vector_store %arg10[%c0_80, %c0_81], %94 {strides = array<i32>} : memref<8x16xf32, #tpu.memory_space<vmem>>, vector<8x16xf32>,
    return
  }
}

</mosaic_0001>

<llo_original>
// kernel: net_forward.2
$region0: #{net_forward.2}
  #allocation0 [shape = 'u32[]', space=smem, size = 0x4, offset = 0x4, fixed_abs, tag = 'smem constant byte address 0x4 - core index']
  #allocation1 [shape = 'u32[72,128]{1,0:T(1,128)}', space=vmem, size = 0x9000, scoped, tag = 'internal scratch']
  %s0 = inlined_call_operand.hbm [shape: f32[3,8,16], index: 0, kind: input, shape index: {}]
  %s1 = inlined_call_operand.hbm [shape: f32[3,8,8], index: 1, kind: input, shape index: {}]
  %s2 = inlined_call_operand.hbm [shape: f32[3,16,128], index: 2, kind: input, shape index: {}]
  %s3 = inlined_call_operand.vmem [shape: f32[3,1,128], index: 3, kind: input, shape index: {}]
  %s4 = inlined_call_operand.hbm [shape: f32[3,128,128], index: 4, kind: input, shape index: {}]
  %s5 = inlined_call_operand.hbm [shape: f32[3,1,128], index: 5, kind: input, shape index: {}]
  %s6 = inlined_call_operand.hbm [shape: f32[3,128,128], index: 6, kind: input, shape index: {}]
  %s7 = inlined_call_operand.hbm [shape: f32[3,1,128], index: 7, kind: input, shape index: {}]
  %s8 = inlined_call_operand.hbm [shape: f32[3,8,128], index: 8, kind: output, shape index: {0}]
  %s9 = inlined_call_operand.vmem [shape: f32[3,8,128], index: 9, kind: output, shape index: {1}]
  %10 = xla_tuple %s8, %s9
  %s11 = sld [smem:[#allocation0]]
  $region101: #{net_forward.2} parent=0
    _
  %s13 = ssub.s32 1, %s11
  %s14 = scalar_select 0, %s13, %s11
  $region1: #{net_forward.2} parent=0
    #allocation2 [shape = 'u8[8192]{0}', space=vmem, size = 0x2000, scoped, tag = 'input window, operand 0']
    #allocation3 [shape = 's32[2]{0}', space=sflag, size = 0x8, scoped, tag = 'scoped memory for net_forward.2']
    #allocation4 [shape = 's32[2]{0}', space=sflag, size = 0x8, scoped, tag = 'scoped memory for net_forward.2']
    #allocation5 [shape = 'u8[8192]{0}', space=vmem, size = 0x2000, scoped, tag = 'input window, operand 1']
    #allocation6 [shape = 's32[2]{0}', space=sflag, size = 0x8, scoped, tag = 'scoped memory for net_forward.2']
    #allocation7 [shape = 'u8[16384]{0}', space=vmem, size = 0x4000, scoped, tag = 'input window, operand 2']
    #allocation8 [shape = 'u8[131072]{0}', space=vmem, size = 0x20000, scoped, tag = 'input window, operand 4']
    #allocation9 [shape = 's32[2]{0}', space=sflag, size = 0x8, scoped, tag = 'scoped memory for net_forward.2']
    #allocation10 [shape = 'u8[1024]{0}', space=vmem, size = 0x400, scoped, tag = 'input window, operand 5']
    #allocation11 [shape = 'u8[131072]{0}', space=vmem, size = 0x20000, scoped, tag = 'input window, operand 6']
    #allocation12 [shape = 's32[2]{0}', space=sflag, size = 0x8, scoped, tag = 'scoped memory for net_forward.2']
    #allocation13 [shape = 'u8[1024]{0}', space=vmem, size = 0x400, scoped, tag = 'input window, operand 7']
    #allocation14 [shape = 'u8[8192]{0}', space=vmem, size = 0x2000, scoped, tag = 'output window, operand 0']
    %15 = vsyncpa [#allocation3], 0
    %s16 = scalar_lea.sflag [#allocation3], 1
    %17 = vsyncpa %s16, 0
    %18 = vsyncpa [#allocation6], 0
    %s19 = scalar_lea.sflag [#allocation6], 1
    %20 = vsyncpa %s19, 0
    %21 = vsyncpa [#allocation9], 0
    %s22 = scalar_lea.sflag [#allocation9], 1
    %23 = vsyncpa %s22, 0
    %24 = vsyncpa [#allocation12], 0
    %s25 = scalar_lea.sflag [#allocation12], 1
    %26 = vsyncpa %s25, 0
    %27 = vsyncpa [#allocation4], 0
    %s28 = scalar_lea.sflag [#allocation4], 1
    %29 = vsyncpa %s28, 0
    loop: start=0, step=1, limit=5
    $region2: #{net_forward.2} parent=1 // loop_pre_header
      _
    $region3: #{net_forward.2} parent=1 // loop_header
      %s31 = sphi 0, %s35
      %p32 = scmp.ge.s32.totalorder %s31, 5
      %s41 = sphi 0, %s43
      %s44 = sphi 0, %s41
      %s45 = sphi 0, %s44
      %s61 = sphi 0, %s45
      %s67 = sphi 0, %s69
      %s70 = sphi 0, %s67
      %s71 = sphi 0, %s70
      %s87 = sphi 0, %s71
      %s93 = sphi 0, %s95
      %s96 = sphi 0, %s93
      %s97 = sphi 0, %s96
      %s113 = sphi 0, %s97
      %s119 = sphi 0, %s121
      %s122 = sphi 0, %s119
      %s123 = sphi 0, %s122
      %s139 = sphi 0, %s123
      %s145 = sphi 0, %s147
      %s148 = sphi 0, %s145
      %s149 = sphi 0, %s148
      %s165 = sphi 0, %s149
      %s171 = sphi 0, %s173
      %s174 = sphi 0, %s171
      %s175 = sphi 0, %s174
      %s191 = sphi 0, %s175
      %s197 = sphi 0, %s199
      %s200 = sphi 0, %s197
      %s201 = sphi 0, %s200
      %s217 = sphi 0, %s201
      %s223 = sphi 0, %s225
      %s226 = sphi 0, %s223
      %s227 = sphi 0, %s226
      %s243 = sphi 0, %s227
      %s249 = sphi 0, %s251
      %s252 = sphi 0, %s249
      %s253 = sphi 0, %s252
      %s269 = sphi 0, %s253
      %s275 = sphi 0, %s277
      %s278 = sphi 0, %s275
      %s279 = sphi 0, %s278
      %s295 = sphi 0, %s279
    $region4: #{net_forward.2} parent=1 // loop_header_branch
      %34 = sbr.rel (%p32) target = $region8
    $region5: #{net_forward.2} parent=1 // loop_body
      %s36 = ssub.s32 %s31, 1
      %s37 = ssub.s32 %s31, 2
      %s38 = sadd.s32 %s31, 1
      %s39 = ssub.s32 %s31, %s38
      %p40 = scmp.eq.s32.totalorder %s39, 0
      %s42 = sadd.s32 %s41, 1
      %s43 = scalar_select %p40, %s41, %s42
      %p46 = pneg %p40
      %p47 = scmp.eq.s32.totalorder %s31, 2
      %p48 = por %p46, %p47
      %p49 = scmp.ne.s32.totalorder %s41, %s44
      %p50 = scmp.eq.s32.totalorder %s31, 0
      %p51 = por %p49, %p50
      %p52 = scmp.ne.s32.totalorder %s41, %s44
      %p53 = scmp.eq.s32.totalorder %s36, 2
      %p54 = por %p52, %p53
      %p55 = scmp.ne.s32.totalorder %s44, %s45
      %p56 = scmp.eq.s32.totalorder %s36, 0
      %p57 = por %p55, %p56
      %p58 = scmp.ne.s32.totalorder %s44, %s45
      %p59 = scmp.eq.s32.totalorder %s37, 2
      %p60 = por %p58, %p59
      %p62 = scmp.ne.s32.totalorder %s45, %s61
      %p63 = scmp.eq.s32.totalorder %s37, 0
      %p64 = por %p62, %p63
      %s65 = ssub.s32 %s31, %s38
      %p66 = scmp.eq.s32.totalorder %s65, 0
      %s68 = sadd.s32 %s67, 1
      %s69 = scalar_select %p66, %s67, %s68
      %p72 = pneg %p66
      %p73 = scmp.eq.s32.totalorder %s31, 2
      %p74 = por %p72, %p73
      %p75 = scmp.ne.s32.totalorder %s67, %s70
      %p76 = scmp.eq.s32.totalorder %s31, 0
      %p77 = por %p75, %p76
      %p78 = scmp.ne.s32.totalorder %s67, %s70
      %p79 = scmp.eq.s32.totalorder %s36, 2
      %p80 = por %p78, %p79
      %p81 = scmp.ne.s32.totalorder %s70, %s71
      %p82 = scmp.eq.s32.totalorder %s36, 0
      %p83 = por %p81, %p82
      %p84 = scmp.ne.s32.totalorder %s70, %s71
      %p85 = scmp.eq.s32.totalorder %s37, 2
      %p86 = por %p84, %p85
      %p88 = scmp.ne.s32.totalorder %s71, %s87
      %p89 = scmp.eq.s32.totalorder %s37, 0
      %p90 = por %p88, %p89
      %s91 = ssub.s32 %s31, %s38
      %p92 = scmp.eq.s32.totalorder %s91, 0
      %s94 = sadd.s32 %s93, 1
      %s95 = scalar_select %p92, %s93, %s94
      %p98 = pneg %p92
      %p99 = scmp.eq.s32.totalorder %s31, 2
      %p100 = por %p98, %p99
      %p101 = scmp.ne.s32.totalorder %s93, %s96
      %p102 = scmp.eq.s32.totalorder %s31, 0
      %p103 = por %p101, %p102
      %p104 = scmp.ne.s32.totalorder %s93, %s96
      %p105 = scmp.eq.s32.totalorder %s36, 2
      %p106 = por %p104, %p105
      %p107 = scmp.ne.s32.totalorder %s96, %s97
      %p108 = scmp.eq.s32.totalorder %s36, 0
      %p109 = por %p107, %p108
      %p110 = scmp.ne.s32.totalorder %s96, %s97
      %p111 = scmp.eq.s32.totalorder %s37, 2
      %p112 = por %p110, %p111
      %p114 = scmp.ne.s32.totalorder %s97, %s113
      %p115 = scmp.eq.s32.totalorder %s37, 0
      %p116 = por %p114, %p115
      %s117 = ssub.s32 %s31, %s38
      %p118 = scmp.eq.s32.totalorder %s117, 0
      %s120 = sadd.s32 %s119, 1
      %s121 = scalar_select %p118, %s119, %s120
      %p124 = pneg %p118
      %p125 = scmp.eq.s32.totalorder %s31, 2
      %p126 = por %p124, %p125
      %p127 = scmp.ne.s32.totalorder %s119, %s122
      %p128 = scmp.eq.s32.totalorder %s31, 0
      %p129 = por %p127, %p128
      %p130 = scmp.ne.s32.totalorder %s119, %s122
      %p131 = scmp.eq.s32.totalorder %s36, 2
      %p132 = por %p130, %p131
      %p133 = scmp.ne.s32.totalorder %s122, %s123
      %p134 = scmp.eq.s32.totalorder %s36, 0
      %p135 = por %p133, %p134
      %p136 = scmp.ne.s32.totalorder %s122, %s123
      %p137 = scmp.eq.s32.totalorder %s37, 2
      %p138 = por %p136, %p137
      %p140 = scmp.ne.s32.totalorder %s123, %s139
      %p141 = scmp.eq.s32.totalorder %s37, 0
      %p142 = por %p140, %p141
      %s143 = ssub.s32 %s31, %s38
      %p144 = scmp.eq.s32.totalorder %s143, 0
      %s146 = sadd.s32 %s145, 1
      %s147 = scalar_select %p144, %s145, %s146
      %p150 = pneg %p144
      %p151 = scmp.eq.s32.totalorder %s31, 2
      %p152 = por %p150, %p151
      %p153 = scmp.ne.s32.totalorder %s145, %s148
      %p154 = scmp.eq.s32.totalorder %s31, 0
      %p155 = por %p153, %p154
      %p156 = scmp.ne.s32.totalorder %s145, %s148
      %p157 = scmp.eq.s32.totalorder %s36, 2
      %p158 = por %p156, %p157
      %p159 = scmp.ne.s32.totalorder %s148, %s149
      %p160 = scmp.eq.s32.totalorder %s36, 0
      %p161 = por %p159, %p160
      %p162 = scmp.ne.s32.totalorder %s148, %s149
      %p163 = scmp.eq.s32.totalorder %s37, 2
      %p164 = por %p162, %p163
      %p166 = scmp.ne.s32.totalorder %s149, %s165
      %p167 = scmp.eq.s32.totalorder %s37, 0
      %p168 = por %p166, %p167
      %s169 = ssub.s32 %s31, %s38
      %p170 = scmp.eq.s32.totalorder %s169, 0
      %s172 = sadd.s32 %s171, 1
      %s173 = scalar_select %p170, %s171, %s172
      %p176 = pneg %p170
      %p177 = scmp.eq.s32.totalorder %s31, 2
      %p178 = por %p176, %p177
      %p179 = scmp.ne.s32.totalorder %s171, %s174
      %p180 = scmp.eq.s32.totalorder %s31, 0
      %p181 = por %p179, %p180
      %p182 = scmp.ne.s32.totalorder %s171, %s174
      %p183 = scmp.eq.s32.totalorder %s36, 2
      %p184 = por %p182, %p183
      %p185 = scmp.ne.s32.totalorder %s174, %s175
      %p186 = scmp.eq.s32.totalorder %s36, 0
      %p187 = por %p185, %p186
      %p188 = scmp.ne.s32.totalorder %s174, %s175
      %p189 = scmp.eq.s32.totalorder %s37, 2
      %p190 = por %p188, %p189
      %p192 = scmp.ne.s32.totalorder %s175, %s191
      %p193 = scmp.eq.s32.totalorder %s37, 0
      %p194 = por %p192, %p193
      %s195 = ssub.s32 %s31, %s38
      %p196 = scmp.eq.s32.totalorder %s195, 0
      %s198 = sadd.s32 %s197, 1
      %s199 = scalar_select %p196, %s197, %s198
      %p202 = pneg %p196
      %p203 = scmp.eq.s32.totalorder %s31, 2
      %p204 = por %p202, %p203
      %p205 = scmp.ne.s32.totalorder %s197, %s200
      %p206 = scmp.eq.s32.totalorder %s31, 0
      %p207 = por %p205, %p206
      %p208 = scmp.ne.s32.totalorder %s197, %s200
      %p209 = scmp.eq.s32.totalorder %s36, 2
      %p210 = por %p208, %p209
      %p211 = scmp.ne.s32.totalorder %s200, %s201
      %p212 = scmp.eq.s32.totalorder %s36, 0
      %p213 = por %p211, %p212
      %p214 = scmp.ne.s32.totalorder %s200, %s201
      %p215 = scmp.eq.s32.totalorder %s37, 2
      %p216 = por %p214, %p215
      %p218 = scmp.ne.s32.totalorder %s201, %s217
      %p219 = scmp.eq.s32.totalorder %s37, 0
      %p220 = por %p218, %p219
      %s221 = ssub.s32 %s31, %s38
      %p222 = scmp.eq.s32.totalorder %s221, 0
      %s224 = sadd.s32 %s223, 1
      %s225 = scalar_select %p222, %s223, %s224
      %p228 = pneg %p222
      %p229 = scmp.eq.s32.totalorder %s31, 2
      %p230 = por %p228, %p229
      %p231 = scmp.ne.s32.totalorder %s223, %s226
      %p232 = scmp.eq.s32.totalorder %s31, 0
      %p233 = por %p231, %p232
      %p234 = scmp.ne.s32.totalorder %s223, %s226
      %p235 = scmp.eq.s32.totalorder %s36, 2
      %p236 = por %p234, %p235
      %p237 = scmp.ne.s32.totalorder %s226, %s227
      %p238 = scmp.eq.s32.totalorder %s36, 0
      %p239 = por %p237, %p238
      %p240 = scmp.ne.s32.totalorder %s226, %s227
      %p241 = scmp.eq.s32.totalorder %s37, 2
      %p242 = por %p240, %p241
      %p244 = scmp.ne.s32.totalorder %s227, %s243
      %p245 = scmp.eq.s32.totalorder %s37, 0
      %p246 = por %p244, %p245
      %s247 = ssub.s32 %s31, %s38
      %p248 = scmp.eq.s32.totalorder %s247, 0
      %s250 = sadd.s32 %s249, 1
      %s251 = scalar_select %p248, %s249, %s250
      %p254 = pneg %p248
      %p255 = scmp.eq.s32.totalorder %s31, 2
      %p256 = por %p254, %p255
      %p257 = scmp.ne.s32.totalorder %s249, %s252
      %p258 = scmp.eq.s32.totalorder %s31, 0
      %p259 = por %p257, %p258
      %p260 = scmp.ne.s32.totalorder %s249, %s252
      %p261 = scmp.eq.s32.totalorder %s36, 2
      %p262 = por %p260, %p261
      %p263 = scmp.ne.s32.totalorder %s252, %s253
      %p264 = scmp.eq.s32.totalorder %s36, 0
      %p265 = por %p263, %p264
      %p266 = scmp.ne.s32.totalorder %s252, %s253
      %p267 = scmp.eq.s32.totalorder %s37, 2
      %p268 = por %p266, %p267
      %p270 = scmp.ne.s32.totalorder %s253, %s269
      %p271 = scmp.eq.s32.totalorder %s37, 0
      %p272 = por %p270, %p271
      %s273 = ssub.s32 %s31, %s38
      %p274 = scmp.eq.s32.totalorder %s273, 0
      %s276 = sadd.s32 %s275, 1
      %s277 = scalar_select %p274, %s275, %s276
      %p280 = pneg %p274
      %p281 = scmp.eq.s32.totalorder %s31, 2
      %p282 = por %p280, %p281
      %p283 = scmp.ne.s32.totalorder %s275, %s278
      %p284 = scmp.eq.s32.totalorder %s31, 0
      %p285 = por %p283, %p284
      %p286 = scmp.ne.s32.totalorder %s275, %s278
      %p287 = scmp.eq.s32.totalorder %s36, 2
      %p288 = por %p286, %p287
      %p289 = scmp.ne.s32.totalorder %s278, %s279
      %p290 = scmp.eq.s32.totalorder %s36, 0
      %p291 = por %p289, %p290
      %p292 = scmp.ne.s32.totalorder %s278, %s279
      %p293 = scmp.eq.s32.totalorder %s37, 2
      %p294 = por %p292, %p293
      %p296 = scmp.ne.s32.totalorder %s279, %s295
      %p297 = scmp.eq.s32.totalorder %s37, 0
      %p298 = por %p296, %p297
      %p299 = scmp.le.s32.totalorder 1, %s31
      %p300 = scmp.lt.s32.totalorder %s31, 4
      %p301 = pnand %p299, %p300
      %p302 = pneg %p301
      // Predicated region
      $region9: #{net_forward.2} parent=5 // pred_check
        _
      $region10: #{net_forward.2} parent=5 // pred_check_branch
        %304 = sbr.rel (%p301) target = $region12
      $region11: #{net_forward.2} parent=5 // pred_region
        %s305 = ssub.s32 %s31, 1
      $region12: #{net_forward.2} parent=5 // pred_fallthru
        _
      %p306 = scmp.lt.s32.totalorder %s31, 3
      // Predicated region
      $region13: #{net_forward.2} parent=5 // pred_check
        %p307 = pneg %p306
      $region14: #{net_forward.2} parent=5 // pred_check_branch
        %309 = sbr.rel (%p307) target = $region16
      $region15: #{net_forward.2} parent=5 // pred_region
        // Predicated region
        $region17: #{net_forward.2} parent=15 // pred_check
          %p310 = pneg %p51
        $region18: #{net_forward.2} parent=15 // pred_check_branch
          %312 = sbr.rel (%p310) target = $region20
        $region19: #{net_forward.2} parent=15 // pred_region
          %s313 = sand.u32 %s41, 1
          %s314 = scalar_lea.sflag [#allocation3], %s313
          %s315 = sand.u32 %s41, 1
          %s316 = smul.addr %s315, 8
          %s317 = scalar_lea.vmem [#allocation2], %s316
          %319 = vsyncadd %s314, 0
          %s320 = smul.addr %s31, 8
          %s321 = scalar_lea.hbm %s0, %s320
          %s323 = sshll.u32 %s321, 4
          %s324 = int_to_ptr.hbm [resolvable:$true] %s323
          %s325 = sshll.u32 %s317, 4
          %s326 = int_to_ptr.vmem [resolvable:$true] %s325
          %328 = dma.hbm_to_vmem [thread:$0]  %s324, 128, %s326, %s314
        $region20: #{net_forward.2} parent=15 // pred_fallthru
          _
        // Predicated region
        $region21: #{net_forward.2} parent=15 // pred_check
          %p329 = pneg %p77
        $region22: #{net_forward.2} parent=15 // pred_check_branch
          %331 = sbr.rel (%p329) target = $region24
        $region23: #{net_forward.2} parent=15 // pred_region
          %s332 = sand.u32 %s31, 1
          %s333 = scalar_lea.sflag [#allocation6], %s332
          %s334 = sand.u32 %s67, 1
          %s335 = smul.addr %s334, 8
          %s336 = scalar_lea.vmem [#allocation5], %s335
          %338 = vsyncadd %s333, 0
          %s339 = smul.addr %s31, 8
          %s340 = scalar_lea.hbm %s1, %s339
          %s342 = sshll.u32 %s340, 4
          %s343 = int_to_ptr.hbm [resolvable:$true] %s342
          %s344 = sshll.u32 %s336, 4
          %s345 = int_to_ptr.vmem [resolvable:$true] %s344
          %347 = dma.hbm_to_vmem [thread:$0]  %s343, 128, %s345, %s333
        $region24: #{net_forward.2} parent=15 // pred_fallthru
          _
        // Predicated region
        $region25: #{net_forward.2} parent=15 // pred_check
          %p348 = pneg %p103
        $region26: #{net_forward.2} parent=15 // pred_check_branch
          %350 = sbr.rel (%p348) target = $region28
        $region27: #{net_forward.2} parent=15 // pred_region
          %s351 = sand.u32 %s31, 1
          %s352 = scalar_lea.sflag [#allocation6], %s351
          %s353 = sand.u32 %s93, 1
          %s354 = smul.addr %s353, 16
          %s355 = scalar_lea.vmem [#allocation7], %s354
          %357 = vsyncadd %s352, 0
          %s358 = smul.addr %s31, 2
          %s359 = smul.addr %s358, 8
          %s360 = scalar_lea.hbm %s2, %s359
          %s361 = sshll.u32 %s360, 4
          %s362 = int_to_ptr.hbm [resolvable:$true] %s361
          %s363 = sshll.u32 %s355, 4
          %s364 = int_to_ptr.vmem [resolvable:$true] %s363
          %369 = dma.hbm_to_vmem [thread:$0]  %s362, 256, %s364, %s352, 128, 128, 8
        $region28: #{net_forward.2} parent=15 // pred_fallthru
          _
        // Predicated region
        $region29: #{net_forward.2} parent=15 // pred_check
          %p370 = pneg %p129
        $region30: #{net_forward.2} parent=15 // pred_check_branch
          %372 = sbr.rel (%p370) target = $region32
        $region31: #{net_forward.2} parent=15 // pred_region
          %p373 = scmp.lt.s32.totalorder %s31, 2
          %s374 = scalar_select %p373, %s31, 2
          %s375 = scalar_lea.vmem %s3, %s374
        $region32: #{net_forward.2} parent=15 // pred_fallthru
          _
        // Predicated region
        $region33: #{net_forward.2} parent=15 // pred_check
          %p376 = pneg %p155
        $region34: #{net_forward.2} parent=15 // pred_check_branch
          %378 = sbr.rel (%p376) target = $region36
        $region35: #{net_forward.2} parent=15 // pred_region
          %s379 = sand.u32 %s31, 1
          %s380 = scalar_lea.sflag [#allocation9], %s379
          %s381 = sand.u32 %s145, 1
          %s382 = smul.addr %s381, 128
          %s383 = scalar_lea.vmem [#allocation8], %s382
          %385 = vsyncadd %s380, 0
          %s386 = smul.addr %s31, 16
          %s387 = smul.addr %s386, 8
          %s388 = scalar_lea.hbm %s4, %s387
          %s389 = sshll.u32 %s388, 4
          %s390 = int_to_ptr.hbm [resolvable:$true] %s389
          %s391 = sshll.u32 %s383, 4
          %s392 = int_to_ptr.vmem [resolvable:$true] %s391
          %397 = dma.hbm_to_vmem [thread:$0]  %s390, 2048, %s392, %s380, 128, 128, 8
        $region36: #{net_forward.2} parent=15 // pred_fallthru
          _
        // Predicated region
        $region37: #{net_forward.2} parent=15 // pred_check
          %p398 = pneg %p181
        $region38: #{net_forward.2} parent=15 // pred_check_branch
          %400 = sbr.rel (%p398) target = $region40
        $region39: #{net_forward.2} parent=15 // pred_region
          %s401 = sand.u32 %s31, 1
          %s402 = scalar_lea.sflag [#allocation9], %s401
          %s403 = sand.u32 %s171, 1
          %s404 = scalar_lea.vmem [#allocation10], %s403
          %406 = vsyncadd %s402, 0
          %s407 = scalar_lea.hbm %s5, %s31
          %s409 = sshll.u32 %s407, 4
          %s410 = int_to_ptr.hbm [resolvable:$true] %s409
          %s411 = sshll.u32 %s404, 4
          %s412 = int_to_ptr.vmem [resolvable:$true] %s411
          %414 = dma.hbm_to_vmem [thread:$0]  %s410, 16, %s412, %s402
        $region40: #{net_forward.2} parent=15 // pred_fallthru
          _
        // Predicated region
        $region41: #{net_forward.2} parent=15 // pred_check
          %p415 = pneg %p207
        $region42: #{net_forward.2} parent=15 // pred_check_branch
          %417 = sbr.rel (%p415) target = $region44
        $region43: #{net_forward.2} parent=15 // pred_region
          %s418 = sand.u32 %s31, 1
          %s419 = scalar_lea.sflag [#allocation12], %s418
          %s420 = sand.u32 %s197, 1
          %s421 = smul.addr %s420, 128
          %s422 = scalar_lea.vmem [#allocation11], %s421
          %424 = vsyncadd %s419, 0
          %s425 = smul.addr %s31, 16
          %s426 = smul.addr %s425, 8
          %s427 = scalar_lea.hbm %s6, %s426
          %s428 = sshll.u32 %s427, 4
          %s429 = int_to_ptr.hbm [resolvable:$true] %s428
          %s430 = sshll.u32 %s422, 4
          %s431 = int_to_ptr.vmem [resolvable:$true] %s430
          %436 = dma.hbm_to_vmem [thread:$0]  %s429, 2048, %s431, %s419, 128, 128, 8
        $region44: #{net_forward.2} parent=15 // pred_fallthru
          _
        // Predicated region
        $region45: #{net_forward.2} parent=15 // pred_check
          %p437 = pneg %p233
        $region46: #{net_forward.2} parent=15 // pred_check_branch
          %439 = sbr.rel (%p437) target = $region48
        $region47: #{net_forward.2} parent=15 // pred_region
          %s440 = sand.u32 %s31, 1
          %s441 = scalar_lea.sflag [#allocation12], %s440
          %s442 = sand.u32 %s223, 1
          %s443 = scalar_lea.vmem [#allocation13], %s442
          %445 = vsyncadd %s441, 0
          %s446 = scalar_lea.hbm %s7, %s31
          %s448 = sshll.u32 %s446, 4
          %s449 = int_to_ptr.hbm [resolvable:$true] %s448
          %s450 = sshll.u32 %s443, 4
          %s451 = int_to_ptr.vmem [resolvable:$true] %s450
          %453 = dma.hbm_to_vmem [thread:$0]  %s449, 16, %s451, %s441
        $region48: #{net_forward.2} parent=15 // pred_fallthru
          _
      $region16: #{net_forward.2} parent=5 // pred_fallthru
        _
      %p454 = scmp.le.s32.totalorder 1, %s31
      %p455 = scmp.lt.s32.totalorder %s31, 4
      %p456 = pnand %p454, %p455
      %p457 = pneg %p456
      // Predicated region
      $region49: #{net_forward.2} parent=5 // pred_check
        _
      $region50: #{net_forward.2} parent=5 // pred_check_branch
        %459 = sbr.rel (%p456) target = $region52
      $region51: #{net_forward.2} parent=5 // pred_region
        %s460 = ssub.s32 %s31, 1
        %s461 = sand.u32 %s44, 1
        %s462 = scalar_lea.sflag [#allocation3], %s461
        %s463 = sand.u32 %s44, 1
        %s464 = smul.addr %s463, 8
        %s465 = scalar_lea.vmem [#allocation2], %s464
        // Predicated region
        $region53: #{net_forward.2} parent=51 // pred_check
          %p466 = pneg %p57
        $region54: #{net_forward.2} parent=51 // pred_check_branch
          %468 = sbr.rel (%p466) target = $region56
        $region55: #{net_forward.2} parent=51 // pred_region
          %470 = dma.done %s462, 128
        $region56: #{net_forward.2} parent=51 // pred_fallthru
          _
        %s471 = sand.u32 %s36, 1
        %s472 = scalar_lea.sflag [#allocation6], %s471
        %s473 = sand.u32 %s70, 1
        %s474 = smul.addr %s473, 8
        %s475 = scalar_lea.vmem [#allocation5], %s474
        // Predicated region
        $region57: #{net_forward.2} parent=51 // pred_check
          %p476 = pneg %p83
        $region58: #{net_forward.2} parent=51 // pred_check_branch
          %478 = sbr.rel (%p476) target = $region60
        $region59: #{net_forward.2} parent=51 // pred_region
          %480 = dma.done %s472, 128
        $region60: #{net_forward.2} parent=51 // pred_fallthru
          _
        %s481 = sand.u32 %s36, 1
        %s482 = scalar_lea.sflag [#allocation6], %s481
        %s483 = sand.u32 %s96, 1
        %s484 = smul.addr %s483, 16
        %s485 = scalar_lea.vmem [#allocation7], %s484
        // Predicated region
        $region61: #{net_forward.2} parent=51 // pred_check
          %p486 = pneg %p109
        $region62: #{net_forward.2} parent=51 // pred_check_branch
          %488 = sbr.rel (%p486) target = $region64
        $region63: #{net_forward.2} parent=51 // pred_region
          %490 = dma.done %s482, 256
        $region64: #{net_forward.2} parent=51 // pred_fallthru
          _
        %s491 = sand.u32 %s36, 1
        %s492 = scalar_lea.sflag [#allocation9], %s491
        %s493 = sand.u32 %s148, 1
        %s494 = smul.addr %s493, 128
        %s495 = scalar_lea.vmem [#allocation8], %s494
        // Predicated region
        $region65: #{net_forward.2} parent=51 // pred_check
          %p496 = pneg %p161
        $region66: #{net_forward.2} parent=51 // pred_check_branch
          %498 = sbr.rel (%p496) target = $region68
        $region67: #{net_forward.2} parent=51 // pred_region
          %500 = dma.done %s492, 2048
        $region68: #{net_forward.2} parent=51 // pred_fallthru
          _
        %s501 = sand.u32 %s36, 1
        %s502 = scalar_lea.sflag [#allocation9], %s501
        %s503 = sand.u32 %s174, 1
        %s504 = scalar_lea.vmem [#allocation10], %s503
        // Predicated region
        $region69: #{net_forward.2} parent=51 // pred_check
          %p505 = pneg %p187
        $region70: #{net_forward.2} parent=51 // pred_check_branch
          %507 = sbr.rel (%p505) target = $region72
        $region71: #{net_forward.2} parent=51 // pred_region
          %509 = dma.done %s502, 16
        $region72: #{net_forward.2} parent=51 // pred_fallthru
          _
        %s510 = sand.u32 %s36, 1
        %s511 = scalar_lea.sflag [#allocation12], %s510
        %s512 = sand.u32 %s200, 1
        %s513 = smul.addr %s512, 128
        %s514 = scalar_lea.vmem [#allocation11], %s513
        // Predicated region
        $region73: #{net_forward.2} parent=51 // pred_check
          %p515 = pneg %p213
        $region74: #{net_forward.2} parent=51 // pred_check_branch
          %517 = sbr.rel (%p515) target = $region76
        $region75: #{net_forward.2} parent=51 // pred_region
          %519 = dma.done %s511, 2048
        $region76: #{net_forward.2} parent=51 // pred_fallthru
          _
        %s520 = sand.u32 %s36, 1
        %s521 = scalar_lea.sflag [#allocation12], %s520
        %s522 = sand.u32 %s226, 1
        %s523 = scalar_lea.vmem [#allocation13], %s522
        // Predicated region
        $region77: #{net_forward.2} parent=51 // pred_check
          %p524 = pneg %p239
        $region78: #{net_forward.2} parent=51 // pred_check_branch
          %526 = sbr.rel (%p524) target = $region80
        $region79: #{net_forward.2} parent=51 // pred_region
          %528 = dma.done %s521, 16
        $region80: #{net_forward.2} parent=51 // pred_fallthru
          _
        %s529 = sand.u32 %s44, 1
        %s530 = scalar_lea.sflag [#allocation3], %s529
        %s531 = sand.u32 %s44, 1
        %s532 = smul.addr %s531, 8
        %s533 = scalar_lea.vmem [#allocation2], %s532
        %p534 = pneg %p57
        %p535 = pneg %p54
        %s536 = sand.u32 %s36, 1
        %s537 = scalar_lea.sflag [#allocation6], %s536
        %s538 = sand.u32 %s70, 1
        %s539 = smul.addr %s538, 8
        %s540 = scalar_lea.vmem [#allocation5], %s539
        %p541 = pneg %p83
        %p542 = pneg %p80
        %s543 = sand.u32 %s36, 1
        %s544 = scalar_lea.sflag [#allocation6], %s543
        %s545 = sand.u32 %s96, 1
        %s546 = smul.addr %s545, 16
        %s547 = scalar_lea.vmem [#allocation7], %s546
        %p548 = pneg %p109
        %p549 = pneg %p106
        %p550 = scmp.lt.s32.totalorder %s36, 2
        %s551 = scalar_select %p550, %s36, 2
        %s552 = scalar_lea.vmem %s3, %s551
        %p553 = pneg %p135
        %p554 = pneg %p132
        %s555 = sand.u32 %s36, 1
        %s556 = scalar_lea.sflag [#allocation9], %s555
        %s557 = sand.u32 %s148, 1
        %s558 = smul.addr %s557, 128
        %s559 = scalar_lea.vmem [#allocation8], %s558
        %p560 = pneg %p161
        %p561 = pneg %p158
        %s562 = sand.u32 %s36, 1
        %s563 = scalar_lea.sflag [#allocation9], %s562
        %s564 = sand.u32 %s174, 1
        %s565 = scalar_lea.vmem [#allocation10], %s564
        %p566 = pneg %p187
        %p567 = pneg %p184
        %s568 = sand.u32 %s36, 1
        %s569 = scalar_lea.sflag [#allocation12], %s568
        %s570 = sand.u32 %s200, 1
        %s571 = smul.addr %s570, 128
        %s572 = scalar_lea.vmem [#allocation11], %s571
        %p573 = pneg %p213
        %p574 = pneg %p210
        %s575 = sand.u32 %s36, 1
        %s576 = scalar_lea.sflag [#allocation12], %s575
        %s577 = sand.u32 %s226, 1
        %s578 = scalar_lea.vmem [#allocation13], %s577
        %p579 = pneg %p239
        %p580 = pneg %p236
        %p581 = pneg %p265
        %p582 = pneg %p262
        %s583 = sand.u32 %s252, 1
        %s584 = scalar_lea.sflag [#allocation4], %s583
        %s585 = sand.u32 %s252, 1
        %s586 = smul.addr %s585, 8
        %s587 = scalar_lea.vmem [#allocation14], %s586
        %p588 = pneg %p291
        %p589 = pneg %p288
        %p590 = scmp.lt.s32.totalorder %s36, 2
        %s591 = scalar_select %p590, %s36, 2
        %s592 = smul.addr %s591, 8
        %s593 = scalar_lea.vmem %s9, %s592
        %p594 = scmp.lt.s32.totalorder %s36, 2
        %s595 = scalar_select %p594, %s36, 2
        %s596 = scalar_lea.vmem %s3, %s595
        %p597 = scmp.lt.s32.totalorder %s36, 2
        %s598 = scalar_select %p597, %s36, 2
        %s599 = smul.addr %s598, 8
        %s600 = scalar_lea.vmem %s9, %s599
        %v601 = vld [vmem:[%s465] sm:$0xff]
        %v602 = vld [vmem:[%s475] sm:$0xff]
        %v603 = vld [vmem:[%s485] sm:$0xff]
        %v604 = vld [vmem:[%s485 + $0x8] sm:$0xff]
        %v605 = vld [vmem:[%s596] sm:$0x1]
        %v607 = vperm.slane %v605, 0
        %vm609 = vcmask 130048
        %v611 = vsel %vm609, %v601, 0
        %613 = vmatpush.msra.mxu0 0.0
        %614 = vmatpush.msra.mxu0 0.0
        %615 = vmatpush.msra.mxu0 0.0
        %616 = vmatpush.msra.mxu0 0.0
        %617 = vmatpush.msra.mxu0 0.0
        %618 = vmatpush.msra.mxu0 0.0
        %619 = vmatpush.msra.mxu0 0.0
        %620 = vmatpush.msra.mxu0 0.0
        %621 = vmatpush.msra.mxu0 0.0
        %622 = vmatpush.msra.mxu0 0.0
        %623 = vmatpush.msra.mxu0 0.0
        %624 = vmatpush.msra.mxu0 0.0
        %625 = vmatpush.msra.mxu0 0.0
        %626 = vmatpush.msra.mxu0 0.0
        %627 = vmatpush.msra.mxu0 %v604
        %628 = vmatpush.msra.mxu0 %v603
        %629 = vmatmul.f32.gmra.mxu0 %v611
        %v630 = vpop.f32.mrf.mxu0
        %v631 = vadd.f32 %v607, %v630
        %632 = vdwg.mxu0
        %633 = vst [vmem:[%s587] sm:$0xff] %v631
        %v634 = vld [vmem:[%s495] sm:$0xff]
        %v635 = vld [vmem:[%s495 + $0x8] sm:$0xff]
        %v636 = vld [vmem:[%s495 + $0x10] sm:$0xff]
        %v637 = vld [vmem:[%s495 + $0x18] sm:$0xff]
        %v638 = vld [vmem:[%s495 + $0x20] sm:$0xff]
        %v639 = vld [vmem:[%s495 + $0x28] sm:$0xff]
        %v640 = vld [vmem:[%s495 + $0x30] sm:$0xff]
        %v641 = vld [vmem:[%s495 + $0x38] sm:$0xff]
        %v642 = vld [vmem:[%s495 + $0x40] sm:$0xff]
        %v643 = vld [vmem:[%s495 + $0x48] sm:$0xff]
        %v644 = vld [vmem:[%s495 + $0x50] sm:$0xff]
        %v645 = vld [vmem:[%s495 + $0x58] sm:$0xff]
        %v646 = vld [vmem:[%s495 + $0x60] sm:$0xff]
        %v647 = vld [vmem:[%s495 + $0x68] sm:$0xff]
        %v648 = vld [vmem:[%s495 + $0x70] sm:$0xff]
        %v649 = vld [vmem:[%s495 + $0x78] sm:$0xff]
        %650 = vmatpush.msra.mxu0 %v649
        %651 = vmatpush.msra.mxu0 %v648
        %652 = vmatpush.msra.mxu0 %v647
        %653 = vmatpush.msra.mxu0 %v646
        %654 = vmatpush.msra.mxu0 %v645
        %655 = vmatpush.msra.mxu0 %v644
        %656 = vmatpush.msra.mxu0 %v643
        %657 = vmatpush.msra.mxu0 %v642
        %658 = vmatpush.msra.mxu0 %v641
        %659 = vmatpush.msra.mxu0 %v640
        %660 = vmatpush.msra.mxu0 %v639
        %661 = vmatpush.msra.mxu0 %v638
        %662 = vmatpush.msra.mxu0 %v637
        %663 = vmatpush.msra.mxu0 %v636
        %664 = vmatpush.msra.mxu0 %v635
        %665 = vmatpush.msra.mxu0 %v634
        %666 = vmatmul.f32.gmra.mxu0 %v631
        %v667 = vpop.f32.mrf.mxu0
        %v668 = vadd.f32 0.0, %v667
        %669 = vdwg.mxu0
        %v670 = vld [vmem:[%s504] sm:$0x1]
        %v672 = vperm.slane %v670, 0
        %vm674 = vcmask 64512
        %v676 = vsel %vm674, %v602, 0
        %678 = vmatpush.msra.mxu0 0.0
        %679 = vmatpush.msra.mxu0 0.0
        %680 = vmatpush.msra.mxu0 0.0
        %681 = vmatpush.msra.mxu0 0.0
        %682 = vmatpush.msra.mxu0 0.0
        %683 = vmatpush.msra.mxu0 0.0
        %684 = vmatpush.msra.mxu0 0.0
        %685 = vmatpush.msra.mxu0 0.0
        %686 = vmatpush.msra.mxu0 0.0
        %687 = vmatpush.msra.mxu0 0.0
        %688 = vmatpush.msra.mxu0 0.0
        %689 = vmatpush.msra.mxu0 0.0
        %690 = vmatpush.msra.mxu0 0.0
        %691 = vmatpush.msra.mxu0 0.0
        %692 = vmatpush.msra.mxu0 0.0
        %693 = vmatpush.msra.mxu0 %v668
        %694 = vmatmul.f32.gmra.mxu0 %v676
        %v695 = vpop.f32.mrf.mxu0
        %v696 = vadd.f32 %v672, %v695
        %697 = vdwg.mxu0
        %v698 = vld [vmem:[%s514] sm:$0xff]
        %v699 = vld [vmem:[%s514 + $0x8] sm:$0xff]
        %v700 = vld [vmem:[%s514 + $0x10] sm:$0xff]
        %v701 = vld [vmem:[%s514 + $0x18] sm:$0xff]
        %v702 = vld [vmem:[%s514 + $0x20] sm:$0xff]
        %v703 = vld [vmem:[%s514 + $0x28] sm:$0xff]
        %v704 = vld [vmem:[%s514 + $0x30] sm:$0xff]
        %v705 = vld [vmem:[%s514 + $0x38] sm:$0xff]
        %v706 = vld [vmem:[%s514 + $0x40] sm:$0xff]
        %v707 = vld [vmem:[%s514 + $0x48] sm:$0xff]
        %v708 = vld [vmem:[%s514 + $0x50] sm:$0xff]
        %v709 = vld [vmem:[%s514 + $0x58] sm:$0xff]
        %v710 = vld [vmem:[%s514 + $0x60] sm:$0xff]
        %v711 = vld [vmem:[%s514 + $0x68] sm:$0xff]
        %v712 = vld [vmem:[%s514 + $0x70] sm:$0xff]
        %v713 = vld [vmem:[%s514 + $0x78] sm:$0xff]
        %714 = vmatpush.msra.mxu0 %v713
        %715 = vmatpush.msra.mxu0 %v712
        %716 = vmatpush.msra.mxu0 %v711
        %717 = vmatpush.msra.mxu0 %v710
        %718 = vmatpush.msra.mxu0 %v709
        %719 = vmatpush.msra.mxu0 %v708
        %720 = vmatpush.msra.mxu0 %v707
        %721 = vmatpush.msra.mxu0 %v706
        %722 = vmatpush.msra.mxu0 %v705
        %723 = vmatpush.msra.mxu0 %v704
        %724 = vmatpush.msra.mxu0 %v703
        %725 = vmatpush.msra.mxu0 %v702
        %726 = vmatpush.msra.mxu0 %v701
        %727 = vmatpush.msra.mxu0 %v700
        %728 = vmatpush.msra.mxu0 %v699
        %729 = vmatpush.msra.mxu0 %v698
        %730 = vmatmul.f32.gmra.mxu0 %v696
        %v731 = vpop.f32.mrf.mxu0
        %v732 = vadd.f32 0.0, %v731
        %733 = vdwg.mxu0
        %v734 = vld [vmem:[%s523] sm:$0x1]
        %v736 = vperm.slane %v734, 0
        %738 = vmatpush.msra.mxu0 0.0
        %739 = vmatpush.msra.mxu0 0.0
        %740 = vmatpush.msra.mxu0 0.0
        %741 = vmatpush.msra.mxu0 0.0
        %742 = vmatpush.msra.mxu0 0.0
        %743 = vmatpush.msra.mxu0 0.0
        %744 = vmatpush.msra.mxu0 0.0
        %745 = vmatpush.msra.mxu0 0.0
        %746 = vmatpush.msra.mxu0 0.0
        %747 = vmatpush.msra.mxu0 0.0
        %748 = vmatpush.msra.mxu0 0.0
        %749 = vmatpush.msra.mxu0 0.0
        %750 = vmatpush.msra.mxu0 0.0
        %751 = vmatpush.msra.mxu0 0.0
        %752 = vmatpush.msra.mxu0 0.0
        %753 = vmatpush.msra.mxu0 %v732
        %754 = vmatmul.f32.gmra.mxu0 %v676
        %v755 = vpop.f32.mrf.mxu0
        %v756 = vadd.f32 %v736, %v755
        %757 = vdwg.mxu0
        %v758 = vmax.f32 %v756, 0.0
        %759 = vst [vmem:[%s600] sm:$0xff] %v758
        %s760 = sand.u32 %s252, 1
        %s761 = scalar_lea.sflag [#allocation4], %s760
        %s762 = sand.u32 %s252, 1
        %s763 = smul.addr %s762, 8
        %s764 = scalar_lea.vmem [#allocation14], %s763
        %p765 = scmp.lt.s32.totalorder %s36, 2
        %s766 = scalar_select %p765, %s36, 2
        %s767 = smul.addr %s766, 8
        %s768 = scalar_lea.vmem %s9, %s767
        // Predicated region
        $region81: #{net_forward.2} parent=51 // pred_check
          %p769 = pneg %p262
        $region82: #{net_forward.2} parent=51 // pred_check_branch
          %771 = sbr.rel (%p769) target = $region84
        $region83: #{net_forward.2} parent=51 // pred_region
          %773 = vsyncadd %s761, 0
          %s774 = smul.addr %s36, 8
          %s775 = scalar_lea.hbm %s8, %s774
          %s777 = sshll.u32 %s764, 4
          %s778 = int_to_ptr.vmem [resolvable:$true] %s777
          %s779 = sshll.u32 %s775, 4
          %s780 = int_to_ptr.hbm [resolvable:$true] %s779
          %782 = dma.vmem_to_hbm [thread:$0]  %s778, 128, %s780, %s761
        $region84: #{net_forward.2} parent=51 // pred_fallthru
          _
        // Predicated region
        $region85: #{net_forward.2} parent=51 // pred_check
          %p783 = pneg %p288
        $region86: #{net_forward.2} parent=51 // pred_check_branch
          %785 = sbr.rel (%p783) target = $region88
        $region87: #{net_forward.2} parent=51 // pred_region
          _
        $region88: #{net_forward.2} parent=51 // pred_fallthru
          _
      $region52: #{net_forward.2} parent=5 // pred_fallthru
        _
      %p786 = scmp.le.s32.totalorder 2, %s31
      // Predicated region
      $region89: #{net_forward.2} parent=5 // pred_check
        %p787 = pneg %p786
      $region90: #{net_forward.2} parent=5 // pred_check_branch
        %789 = sbr.rel (%p787) target = $region92
      $region91: #{net_forward.2} parent=5 // pred_region
        %s790 = ssub.s32 %s31, 2
        // Predicated region
        $region93: #{net_forward.2} parent=91 // pred_check
          %p791 = pneg %p268
        $region94: #{net_forward.2} parent=91 // pred_check_branch
          %793 = sbr.rel (%p791) target = $region96
        $region95: #{net_forward.2} parent=91 // pred_region
          %s794 = sand.u32 %s253, 1
          %s795 = scalar_lea.sflag [#allocation4], %s794
          %s796 = sand.u32 %s253, 1
          %s797 = smul.addr %s796, 8
          %s798 = scalar_lea.vmem [#allocation14], %s797
          %800 = dma.done %s795, 128
        $region96: #{net_forward.2} parent=91 // pred_fallthru
          _
        // Predicated region
        $region97: #{net_forward.2} parent=91 // pred_check
          %p801 = pneg %p294
        $region98: #{net_forward.2} parent=91 // pred_check_branch
          %803 = sbr.rel (%p801) target = $region100
        $region99: #{net_forward.2} parent=91 // pred_region
          %p804 = scmp.lt.s32.totalorder %s37, 2
          %s805 = scalar_select %p804, %s37, 2
          %s806 = smul.addr %s805, 8
          %s807 = scalar_lea.vmem %s9, %s806
        $region100: #{net_forward.2} parent=91 // pred_fallthru
          _
      $region92: #{net_forward.2} parent=5 // pred_fallthru
        _
    $region6: #{net_forward.2} parent=1 // loop_footer
      %s35 = sadd.s32 1, %s31
    $region7: #{net_forward.2} parent=1 // loop_footer_branch
      %30 = sbr.rel target = $region3
    $region8: #{net_forward.2} parent=1 // loop_exit
      _
    %808 = vsyncpa [#allocation3], 1
    %s809 = scalar_lea.sflag [#allocation3], 1
    %810 = vsyncpa %s809, 1
    %811 = vsyncpa [#allocation6], 1
    %s812 = scalar_lea.sflag [#allocation6], 1
    %813 = vsyncpa %s812, 1
    %814 = vsyncpa [#allocation9], 1
    %s815 = scalar_lea.sflag [#allocation9], 1
    %816 = vsyncpa %s815, 1
    %817 = vsyncpa [#allocation12], 1
    %s818 = scalar_lea.sflag [#allocation12], 1
    %819 = vsyncpa %s818, 1
    %820 = vsyncpa [#allocation4], 1
    %s821 = scalar_lea.sflag [#allocation4], 1
    %822 = vsyncpa %s821, 1

// kernel: net_forward.3
$region0: #{net_forward.3}
  #allocation0 [shape = 'u32[]', space=smem, size = 0x4, offset = 0x4, fixed_abs, tag = 'smem constant byte address 0x4 - core index']
  #allocation1 [shape = 'u32[72,128]{1,0:T(1,128)}', space=vmem, size = 0x9000, scoped, tag = 'internal scratch']
  %s0 = inlined_call_operand.vmem [shape: f32[3,8,8], index: 0, kind: input, shape index: {}]
  %s1 = inlined_call_operand.vmem [shape: f32[3,8,128], index: 1, kind: input, shape index: {}]
  %s2 = inlined_call_operand.hbm [shape: f32[3,128,128], index: 2, kind: input, shape index: {}]
  %s3 = inlined_call_operand.vmem [shape: f32[3,1,128], index: 3, kind: input, shape index: {}]
  %s4 = inlined_call_operand.hbm [shape: f32[3,128,128], index: 4, kind: input, shape index: {}]
  %s5 = inlined_call_operand.vmem [shape: f32[3,1,128], index: 5, kind: input, shape index: {}]
  %s6 = inlined_call_operand.vmem [shape: f32[128,16], index: 6, kind: input, shape index: {}]
  %s7 = inlined_call_operand.vmem [shape: f32[1,16], index: 7, kind: input, shape index: {}]
  %s8 = inlined_call_operand.hbm [shape: f32[3,8,128], index: 8, kind: output, shape index: {0}]
  %s9 = inlined_call_operand.hbm [shape: f32[8,128], index: 9, kind: output, shape index: {1}]
  %s10 = inlined_call_operand.hbm [shape: f32[8,16], index: 10, kind: output, shape index: {2}]
  %11 = xla_tuple %s8, %s9, %s10
  %s12 = sld [smem:[#allocation0]]
  $region66: #{net_forward.3} parent=0
    _
  %s14 = ssub.s32 1, %s12
  %s15 = scalar_select 0, %s14, %s12
  $region1: #{net_forward.3} parent=0
    #allocation2 [shape = 'u8[196608]{0}', space=vmem, size = 0x30000, scoped, tag = 'input window, operand 2, single buffered']
    #allocation3 [shape = 's32[1]{0}', space=sflag, size = 0x4, scoped, tag = 'scoped memory for net_forward.3']
    #allocation4 [shape = 's32[1]{0}', space=sflag, size = 0x4, scoped, tag = 'scoped memory for net_forward.3']
    #allocation5 [shape = 'u8[196608]{0}', space=vmem, size = 0x30000, scoped, tag = 'input window, operand 4, single buffered']
    #allocation6 [shape = 's32[1]{0}', space=sflag, size = 0x4, scoped, tag = 'scoped memory for net_forward.3']
    #allocation7 [shape = 'u8[12288]{0}', space=vmem, size = 0x3000, scoped, tag = 'output window, operand 0, single buffered']
    #allocation8 [shape = 'u8[4096]{0}', space=vmem, size = 0x1000, scoped, tag = 'output window, operand 1, single buffered']
    #allocation9 [shape = 's32[1]{0}', space=sflag, size = 0x4, scoped, tag = 'scoped memory for net_forward.3']
    #allocation10 [shape = 'u8[4096]{0}', space=vmem, size = 0x1000, scoped, tag = 'output window, operand 2, single buffered']
    %16 = vsyncpa [#allocation3], 0
    %17 = vsyncpa [#allocation6], 0
    %18 = vsyncpa [#allocation4], 0
    %19 = vsyncpa [#allocation9], 0
    // Predicated region
    $region2: #{net_forward.3} parent=1 // pred_check
      _
    $region3: #{net_forward.3} parent=1 // pred_check_branch
      %21 = sbr.rel (0) target = $region5
    $region4: #{net_forward.3} parent=1 // pred_region
      _
    $region5: #{net_forward.3} parent=1 // pred_fallthru
      _
    // Predicated region
    $region6: #{net_forward.3} parent=1 // pred_check
      _
    $region7: #{net_forward.3} parent=1 // pred_check_branch
      %23 = sbr.rel (0) target = $region9
    $region8: #{net_forward.3} parent=1 // pred_region
      _
    $region9: #{net_forward.3} parent=1 // pred_fallthru
      _
    // Predicated region
    $region10: #{net_forward.3} parent=1 // pred_check
      _
    $region11: #{net_forward.3} parent=1 // pred_check_branch
      %25 = sbr.rel (0) target = $region13
    $region12: #{net_forward.3} parent=1 // pred_region
      %27 = vsyncadd [#allocation3], 0
      %s28 = sshll.u32 %s2, 4
      %s29 = int_to_ptr.hbm [resolvable:$true] %s28
      %s30 = sshll.u32 [#allocation2], 4
      %s31 = int_to_ptr.vmem [resolvable:$true] %s30
      %36 = dma.hbm_to_vmem [thread:$0]  %s29, 6144, %s31, [#allocation3], 128, 128, 8
    $region13: #{net_forward.3} parent=1 // pred_fallthru
      _
    // Predicated region
    $region14: #{net_forward.3} parent=1 // pred_check
      _
    $region15: #{net_forward.3} parent=1 // pred_check_branch
      %38 = sbr.rel (0) target = $region17
    $region16: #{net_forward.3} parent=1 // pred_region
      _
    $region17: #{net_forward.3} parent=1 // pred_fallthru
      _
    // Predicated region
    $region18: #{net_forward.3} parent=1 // pred_check
      _
    $region19: #{net_forward.3} parent=1 // pred_check_branch
      %40 = sbr.rel (0) target = $region21
    $region20: #{net_forward.3} parent=1 // pred_region
      %42 = vsyncadd [#allocation6], 0
      %s43 = sshll.u32 %s4, 4
      %s44 = int_to_ptr.hbm [resolvable:$true] %s43
      %s45 = sshll.u32 [#allocation5], 4
      %s46 = int_to_ptr.vmem [resolvable:$true] %s45
      %51 = dma.hbm_to_vmem [thread:$0]  %s44, 6144, %s46, [#allocation6], 128, 128, 8
    $region21: #{net_forward.3} parent=1 // pred_fallthru
      _
    // Predicated region
    $region22: #{net_forward.3} parent=1 // pred_check
      _
    $region23: #{net_forward.3} parent=1 // pred_check_branch
      %53 = sbr.rel (0) target = $region25
    $region24: #{net_forward.3} parent=1 // pred_region
      _
    $region25: #{net_forward.3} parent=1 // pred_fallthru
      _
    // Predicated region
    $region26: #{net_forward.3} parent=1 // pred_check
      _
    $region27: #{net_forward.3} parent=1 // pred_check_branch
      %55 = sbr.rel (0) target = $region29
    $region28: #{net_forward.3} parent=1 // pred_region
      _
    $region29: #{net_forward.3} parent=1 // pred_fallthru
      _
    // Predicated region
    $region30: #{net_forward.3} parent=1 // pred_check
      _
    $region31: #{net_forward.3} parent=1 // pred_check_branch
      %57 = sbr.rel (0) target = $region33
    $region32: #{net_forward.3} parent=1 // pred_region
      _
    $region33: #{net_forward.3} parent=1 // pred_fallthru
      _
    // Predicated region
    $region34: #{net_forward.3} parent=1 // pred_check
      _
    $region35: #{net_forward.3} parent=1 // pred_check_branch
      %59 = sbr.rel (0) target = $region37
    $region36: #{net_forward.3} parent=1 // pred_region
      %61 = dma.done [#allocation3], 6144
    $region37: #{net_forward.3} parent=1 // pred_fallthru
      _
    // Predicated region
    $region38: #{net_forward.3} parent=1 // pred_check
      _
    $region39: #{net_forward.3} parent=1 // pred_check_branch
      %63 = sbr.rel (0) target = $region41
    $region40: #{net_forward.3} parent=1 // pred_region
      %65 = dma.done [#allocation6], 6144
    $region41: #{net_forward.3} parent=1 // pred_fallthru
      _
    %v66 = vld [vmem:[%s1] sm:$0xff]
    %s67 = scalar_lea.vmem %s1, 8
    %v68 = vld [vmem:[%s67] sm:$0xff]
    %s69 = scalar_lea.vmem %s1, 16
    %v70 = vld [vmem:[%s69] sm:$0xff]
    %v71 = vadd.f32 %v66, %v68
    %v72 = vadd.f32 %v71, %v70
    %v73 = vsub.f32 %v70, %v72
    %v74 = vld [vmem:[%s0] sm:$0xff]
    %v75 = vld [vmem:[#allocation2] sm:$0xff]
    %v76 = vld [vmem:[#allocation2 + $0x8] sm:$0xff]
    %v77 = vld [vmem:[#allocation2 + $0x10] sm:$0xff]
    %v78 = vld [vmem:[#allocation2 + $0x18] sm:$0xff]
    %v79 = vld [vmem:[#allocation2 + $0x20] sm:$0xff]
    %v80 = vld [vmem:[#allocation2 + $0x28] sm:$0xff]
    %v81 = vld [vmem:[#allocation2 + $0x30] sm:$0xff]
    %v82 = vld [vmem:[#allocation2 + $0x38] sm:$0xff]
    %v83 = vld [vmem:[#allocation2 + $0x40] sm:$0xff]
    %v84 = vld [vmem:[#allocation2 + $0x48] sm:$0xff]
    %v85 = vld [vmem:[#allocation2 + $0x50] sm:$0xff]
    %v86 = vld [vmem:[#allocation2 + $0x58] sm:$0xff]
    %v87 = vld [vmem:[#allocation2 + $0x60] sm:$0xff]
    %v88 = vld [vmem:[#allocation2 + $0x68] sm:$0xff]
    %v89 = vld [vmem:[#allocation2 + $0x70] sm:$0xff]
    %v90 = vld [vmem:[#allocation2 + $0x78] sm:$0xff]
    %91 = vmatpush.msra.mxu0 %v90
    %92 = vmatpush.msra.mxu0 %v89
    %93 = vmatpush.msra.mxu0 %v88
    %94 = vmatpush.msra.mxu0 %v87
    %95 = vmatpush.msra.mxu0 %v86
    %96 = vmatpush.msra.mxu0 %v85
    %97 = vmatpush.msra.mxu0 %v84
    %98 = vmatpush.msra.mxu0 %v83
    %99 = vmatpush.msra.mxu0 %v82
    %100 = vmatpush.msra.mxu0 %v81
    %101 = vmatpush.msra.mxu0 %v80
    %102 = vmatpush.msra.mxu0 %v79
    %103 = vmatpush.msra.mxu0 %v78
    %104 = vmatpush.msra.mxu0 %v77
    %105 = vmatpush.msra.mxu0 %v76
    %106 = vmatpush.msra.mxu0 %v75
    %107 = vmatmul.f32.gmra.mxu0 %v73
    %v108 = vpop.f32.mrf.mxu0
    %v109 = vadd.f32 0.0, %v108
    %110 = vdwg.mxu0
    %v111 = vld [vmem:[%s3] sm:$0x1]
    %v113 = vperm.slane %v111, 0
    %vm115 = vcmask 64512
    %v117 = vsel %vm115, %v74, 0
    %119 = vmatpush.msra.mxu0 0.0
    %120 = vmatpush.msra.mxu0 0.0
    %121 = vmatpush.msra.mxu0 0.0
    %122 = vmatpush.msra.mxu0 0.0
    %123 = vmatpush.msra.mxu0 0.0
    %124 = vmatpush.msra.mxu0 0.0
    %125 = vmatpush.msra.mxu0 0.0
    %126 = vmatpush.msra.mxu0 0.0
    %127 = vmatpush.msra.mxu0 0.0
    %128 = vmatpush.msra.mxu0 0.0
    %129 = vmatpush.msra.mxu0 0.0
    %130 = vmatpush.msra.mxu0 0.0
    %131 = vmatpush.msra.mxu0 0.0
    %132 = vmatpush.msra.mxu0 0.0
    %133 = vmatpush.msra.mxu0 0.0
    %134 = vmatpush.msra.mxu0 %v109
    %135 = vmatmul.f32.gmra.mxu0 %v117
    %v136 = vpop.f32.mrf.mxu0
    %v137 = vadd.f32 %v113, %v136
    %138 = vdwg.mxu0
    %v139 = vld [vmem:[#allocation5] sm:$0xff]
    %v140 = vld [vmem:[#allocation5 + $0x8] sm:$0xff]
    %v141 = vld [vmem:[#allocation5 + $0x10] sm:$0xff]
    %v142 = vld [vmem:[#allocation5 + $0x18] sm:$0xff]
    %v143 = vld [vmem:[#allocation5 + $0x20] sm:$0xff]
    %v144 = vld [vmem:[#allocation5 + $0x28] sm:$0xff]
    %v145 = vld [vmem:[#allocation5 + $0x30] sm:$0xff]
    %v146 = vld [vmem:[#allocation5 + $0x38] sm:$0xff]
    %v147 = vld [vmem:[#allocation5 + $0x40] sm:$0xff]
    %v148 = vld [vmem:[#allocation5 + $0x48] sm:$0xff]
    %v149 = vld [vmem:[#allocation5 + $0x50] sm:$0xff]
    %v150 = vld [vmem:[#allocation5 + $0x58] sm:$0xff]
    %v151 = vld [vmem:[#allocation5 + $0x60] sm:$0xff]
    %v152 = vld [vmem:[#allocation5 + $0x68] sm:$0xff]
    %v153 = vld [vmem:[#allocation5 + $0x70] sm:$0xff]
    %v154 = vld [vmem:[#allocation5 + $0x78] sm:$0xff]
    %155 = vmatpush.msra.mxu0 %v154
    %156 = vmatpush.msra.mxu0 %v153
    %157 = vmatpush.msra.mxu0 %v152
    %158 = vmatpush.msra.mxu0 %v151
    %159 = vmatpush.msra.mxu0 %v150
    %160 = vmatpush.msra.mxu0 %v149
    %161 = vmatpush.msra.mxu0 %v148
    %162 = vmatpush.msra.mxu0 %v147
    %163 = vmatpush.msra.mxu0 %v146
    %164 = vmatpush.msra.mxu0 %v145
    %165 = vmatpush.msra.mxu0 %v144
    %166 = vmatpush.msra.mxu0 %v143
    %167 = vmatpush.msra.mxu0 %v142
    %168 = vmatpush.msra.mxu0 %v141
    %169 = vmatpush.msra.mxu0 %v140
    %170 = vmatpush.msra.mxu0 %v139
    %171 = vmatmul.f32.gmra.mxu0 %v137
    %v172 = vpop.f32.mrf.mxu0
    %v173 = vadd.f32 0.0, %v172
    %174 = vdwg.mxu0
    %v175 = vld [vmem:[%s5] sm:$0x1]
    %v177 = vperm.slane %v175, 0
    %179 = vmatpush.msra.mxu0 0.0
    %180 = vmatpush.msra.mxu0 0.0
    %181 = vmatpush.msra.mxu0 0.0
    %182 = vmatpush.msra.mxu0 0.0
    %183 = vmatpush.msra.mxu0 0.0
    %184 = vmatpush.msra.mxu0 0.0
    %185 = vmatpush.msra.mxu0 0.0
    %186 = vmatpush.msra.mxu0 0.0
    %187 = vmatpush.msra.mxu0 0.0
    %188 = vmatpush.msra.mxu0 0.0
    %189 = vmatpush.msra.mxu0 0.0
    %190 = vmatpush.msra.mxu0 0.0
    %191 = vmatpush.msra.mxu0 0.0
    %192 = vmatpush.msra.mxu0 0.0
    %193 = vmatpush.msra.mxu0 0.0
    %194 = vmatpush.msra.mxu0 %v173
    %195 = vmatmul.f32.gmra.mxu0 %v117
    %v196 = vpop.f32.mrf.mxu0
    %v197 = vadd.f32 %v177, %v196
    %198 = vdwg.mxu0
    %199 = vst [vmem:[#allocation7] sm:$0xff] %v197
    %v200 = vadd.f32 %v68, %v197
    %v201 = vadd.f32 %v200, %v70
    %v202 = vsub.f32 %v70, %v201
    %s203 = scalar_lea.vmem %s0, 8
    %v204 = vld [vmem:[%s203] sm:$0xff]
    %s205 = scalar_lea.vmem [#allocation2], 128
    %v206 = vld [vmem:[%s205] sm:$0xff]
    %v207 = vld [vmem:[%s205 + $0x8] sm:$0xff]
    %v208 = vld [vmem:[%s205 + $0x10] sm:$0xff]
    %v209 = vld [vmem:[%s205 + $0x18] sm:$0xff]
    %v210 = vld [vmem:[%s205 + $0x20] sm:$0xff]
    %v211 = vld [vmem:[%s205 + $0x28] sm:$0xff]
    %v212 = vld [vmem:[%s205 + $0x30] sm:$0xff]
    %v213 = vld [vmem:[%s205 + $0x38] sm:$0xff]
    %v214 = vld [vmem:[%s205 + $0x40] sm:$0xff]
    %v215 = vld [vmem:[%s205 + $0x48] sm:$0xff]
    %v216 = vld [vmem:[%s205 + $0x50] sm:$0xff]
    %v217 = vld [vmem:[%s205 + $0x58] sm:$0xff]
    %v218 = vld [vmem:[%s205 + $0x60] sm:$0xff]
    %v219 = vld [vmem:[%s205 + $0x68] sm:$0xff]
    %v220 = vld [vmem:[%s205 + $0x70] sm:$0xff]
    %v221 = vld [vmem:[%s205 + $0x78] sm:$0xff]
    %222 = vmatpush.msra.mxu0 %v221
    %223 = vmatpush.msra.mxu0 %v220
    %224 = vmatpush.msra.mxu0 %v219
    %225 = vmatpush.msra.mxu0 %v218
    %226 = vmatpush.msra.mxu0 %v217
    %227 = vmatpush.msra.mxu0 %v216
    %228 = vmatpush.msra.mxu0 %v215
    %229 = vmatpush.msra.mxu0 %v214
    %230 = vmatpush.msra.mxu0 %v213
    %231 = vmatpush.msra.mxu0 %v212
    %232 = vmatpush.msra.mxu0 %v211
    %233 = vmatpush.msra.mxu0 %v210
    %234 = vmatpush.msra.mxu0 %v209
    %235 = vmatpush.msra.mxu0 %v208
    %236 = vmatpush.msra.mxu0 %v207
    %237 = vmatpush.msra.mxu0 %v206
    %238 = vmatmul.f32.gmra.mxu0 %v202
    %v239 = vpop.f32.mrf.mxu0
    %v240 = vadd.f32 0.0, %v239
    %241 = vdwg.mxu0
    %s242 = scalar_lea.vmem %s3, 1
    %v243 = vld [vmem:[%s242] sm:$0x1]
    %v245 = vperm.slane %v243, 0
    %v248 = vsel %vm115, %v204, 0
    %250 = vmatpush.msra.mxu0 0.0
    %251 = vmatpush.msra.mxu0 0.0
    %252 = vmatpush.msra.mxu0 0.0
    %253 = vmatpush.msra.mxu0 0.0
    %254 = vmatpush.msra.mxu0 0.0
    %255 = vmatpush.msra.mxu0 0.0
    %256 = vmatpush.msra.mxu0 0.0
    %257 = vmatpush.msra.mxu0 0.0
    %258 = vmatpush.msra.mxu0 0.0
    %259 = vmatpush.msra.mxu0 0.0
    %260 = vmatpush.msra.mxu0 0.0
    %261 = vmatpush.msra.mxu0 0.0
    %262 = vmatpush.msra.mxu0 0.0
    %263 = vmatpush.msra.mxu0 0.0
    %264 = vmatpush.msra.mxu0 0.0
    %265 = vmatpush.msra.mxu0 %v240
    %266 = vmatmul.f32.gmra.mxu0 %v248
    %v267 = vpop.f32.mrf.mxu0
    %v268 = vadd.f32 %v245, %v267
    %269 = vdwg.mxu0
    %s270 = scalar_lea.vmem [#allocation5], 128
    %v271 = vld [vmem:[%s270] sm:$0xff]
    %v272 = vld [vmem:[%s270 + $0x8] sm:$0xff]
    %v273 = vld [vmem:[%s270 + $0x10] sm:$0xff]
    %v274 = vld [vmem:[%s270 + $0x18] sm:$0xff]
    %v275 = vld [vmem:[%s270 + $0x20] sm:$0xff]
    %v276 = vld [vmem:[%s270 + $0x28] sm:$0xff]
    %v277 = vld [vmem:[%s270 + $0x30] sm:$0xff]
    %v278 = vld [vmem:[%s270 + $0x38] sm:$0xff]
    %v279 = vld [vmem:[%s270 + $0x40] sm:$0xff]
    %v280 = vld [vmem:[%s270 + $0x48] sm:$0xff]
    %v281 = vld [vmem:[%s270 + $0x50] sm:$0xff]
    %v282 = vld [vmem:[%s270 + $0x58] sm:$0xff]
    %v283 = vld [vmem:[%s270 + $0x60] sm:$0xff]
    %v284 = vld [vmem:[%s270 + $0x68] sm:$0xff]
    %v285 = vld [vmem:[%s270 + $0x70] sm:$0xff]
    %v286 = vld [vmem:[%s270 + $0x78] sm:$0xff]
    %287 = vmatpush.msra.mxu0 %v286
    %288 = vmatpush.msra.mxu0 %v285
    %289 = vmatpush.msra.mxu0 %v284
    %290 = vmatpush.msra.mxu0 %v283
    %291 = vmatpush.msra.mxu0 %v282
    %292 = vmatpush.msra.mxu0 %v281
    %293 = vmatpush.msra.mxu0 %v280
    %294 = vmatpush.msra.mxu0 %v279
    %295 = vmatpush.msra.mxu0 %v278
    %296 = vmatpush.msra.mxu0 %v277
    %297 = vmatpush.msra.mxu0 %v276
    %298 = vmatpush.msra.mxu0 %v275
    %299 = vmatpush.msra.mxu0 %v274
    %300 = vmatpush.msra.mxu0 %v273
    %301 = vmatpush.msra.mxu0 %v272
    %302 = vmatpush.msra.mxu0 %v271
    %303 = vmatmul.f32.gmra.mxu0 %v268
    %v304 = vpop.f32.mrf.mxu0
    %v305 = vadd.f32 0.0, %v304
    %306 = vdwg.mxu0
    %s307 = scalar_lea.vmem %s5, 1
    %v308 = vld [vmem:[%s307] sm:$0x1]
    %v310 = vperm.slane %v308, 0
    %312 = vmatpush.msra.mxu0 0.0
    %313 = vmatpush.msra.mxu0 0.0
    %314 = vmatpush.msra.mxu0 0.0
    %315 = vmatpush.msra.mxu0 0.0
    %316 = vmatpush.msra.mxu0 0.0
    %317 = vmatpush.msra.mxu0 0.0
    %318 = vmatpush.msra.mxu0 0.0
    %319 = vmatpush.msra.mxu0 0.0
    %320 = vmatpush.msra.mxu0 0.0
    %321 = vmatpush.msra.mxu0 0.0
    %322 = vmatpush.msra.mxu0 0.0
    %323 = vmatpush.msra.mxu0 0.0
    %324 = vmatpush.msra.mxu0 0.0
    %325 = vmatpush.msra.mxu0 0.0
    %326 = vmatpush.msra.mxu0 0.0
    %327 = vmatpush.msra.mxu0 %v305
    %328 = vmatmul.f32.gmra.mxu0 %v248
    %v329 = vpop.f32.mrf.mxu0
    %v330 = vadd.f32 %v310, %v329
    %331 = vdwg.mxu0
    %s332 = scalar_lea.vmem [#allocation7], 8
    %333 = vst [vmem:[%s332] sm:$0xff] %v330
    %v334 = vadd.f32 %v70, %v197
    %v335 = vadd.f32 %v334, %v330
    %v336 = vsub.f32 %v335, %v335
    %s337 = scalar_lea.vmem %s0, 16
    %v338 = vld [vmem:[%s337] sm:$0xff]
    %s339 = scalar_lea.vmem [#allocation2], 256
    %v340 = vld [vmem:[%s339] sm:$0xff]
    %v341 = vld [vmem:[%s339 + $0x8] sm:$0xff]
    %v342 = vld [vmem:[%s339 + $0x10] sm:$0xff]
    %v343 = vld [vmem:[%s339 + $0x18] sm:$0xff]
    %v344 = vld [vmem:[%s339 + $0x20] sm:$0xff]
    %v345 = vld [vmem:[%s339 + $0x28] sm:$0xff]
    %v346 = vld [vmem:[%s339 + $0x30] sm:$0xff]
    %v347 = vld [vmem:[%s339 + $0x38] sm:$0xff]
    %v348 = vld [vmem:[%s339 + $0x40] sm:$0xff]
    %v349 = vld [vmem:[%s339 + $0x48] sm:$0xff]
    %v350 = vld [vmem:[%s339 + $0x50] sm:$0xff]
    %v351 = vld [vmem:[%s339 + $0x58] sm:$0xff]
    %v352 = vld [vmem:[%s339 + $0x60] sm:$0xff]
    %v353 = vld [vmem:[%s339 + $0x68] sm:$0xff]
    %v354 = vld [vmem:[%s339 + $0x70] sm:$0xff]
    %v355 = vld [vmem:[%s339 + $0x78] sm:$0xff]
    %356 = vmatpush.msra.mxu0 %v355
    %357 = vmatpush.msra.mxu0 %v354
    %358 = vmatpush.msra.mxu0 %v353
    %359 = vmatpush.msra.mxu0 %v352
    %360 = vmatpush.msra.mxu0 %v351
    %361 = vmatpush.msra.mxu0 %v350
    %362 = vmatpush.msra.mxu0 %v349
    %363 = vmatpush.msra.mxu0 %v348
    %364 = vmatpush.msra.mxu0 %v347
    %365 = vmatpush.msra.mxu0 %v346
    %366 = vmatpush.msra.mxu0 %v345
    %367 = vmatpush.msra.mxu0 %v344
    %368 = vmatpush.msra.mxu0 %v343
    %369 = vmatpush.msra.mxu0 %v342
    %370 = vmatpush.msra.mxu0 %v341
    %371 = vmatpush.msra.mxu0 %v340
    %372 = vmatmul.f32.gmra.mxu0 %v336
    %v373 = vpop.f32.mrf.mxu0
    %v374 = vadd.f32 0.0, %v373
    %375 = vdwg.mxu0
    %s376 = scalar_lea.vmem %s3, 2
    %v377 = vld [vmem:[%s376] sm:$0x1]
    %v379 = vperm.slane %v377, 0
    %v382 = vsel %vm115, %v338, 0
    %384 = vmatpush.msra.mxu0 0.0
    %385 = vmatpush.msra.mxu0 0.0
    %386 = vmatpush.msra.mxu0 0.0
    %387 = vmatpush.msra.mxu0 0.0
    %388 = vmatpush.msra.mxu0 0.0
    %389 = vmatpush.msra.mxu0 0.0
    %390 = vmatpush.msra.mxu0 0.0
    %391 = vmatpush.msra.mxu0 0.0
    %392 = vmatpush.msra.mxu0 0.0
    %393 = vmatpush.msra.mxu0 0.0
    %394 = vmatpush.msra.mxu0 0.0
    %395 = vmatpush.msra.mxu0 0.0
    %396 = vmatpush.msra.mxu0 0.0
    %397 = vmatpush.msra.mxu0 0.0
    %398 = vmatpush.msra.mxu0 0.0
    %399 = vmatpush.msra.mxu0 %v374
    %400 = vmatmul.f32.gmra.mxu0 %v382
    %v401 = vpop.f32.mrf.mxu0
    %v402 = vadd.f32 %v379, %v401
    %403 = vdwg.mxu0
    %s404 = scalar_lea.vmem [#allocation5], 256
    %v405 = vld [vmem:[%s404] sm:$0xff]
    %v406 = vld [vmem:[%s404 + $0x8] sm:$0xff]
    %v407 = vld [vmem:[%s404 + $0x10] sm:$0xff]
    %v408 = vld [vmem:[%s404 + $0x18] sm:$0xff]
    %v409 = vld [vmem:[%s404 + $0x20] sm:$0xff]
    %v410 = vld [vmem:[%s404 + $0x28] sm:$0xff]
    %v411 = vld [vmem:[%s404 + $0x30] sm:$0xff]
    %v412 = vld [vmem:[%s404 + $0x38] sm:$0xff]
    %v413 = vld [vmem:[%s404 + $0x40] sm:$0xff]
    %v414 = vld [vmem:[%s404 + $0x48] sm:$0xff]
    %v415 = vld [vmem:[%s404 + $0x50] sm:$0xff]
    %v416 = vld [vmem:[%s404 + $0x58] sm:$0xff]
    %v417 = vld [vmem:[%s404 + $0x60] sm:$0xff]
    %v418 = vld [vmem:[%s404 + $0x68] sm:$0xff]
    %v419 = vld [vmem:[%s404 + $0x70] sm:$0xff]
    %v420 = vld [vmem:[%s404 + $0x78] sm:$0xff]
    %421 = vmatpush.msra.mxu0 %v420
    %422 = vmatpush.msra.mxu0 %v419
    %423 = vmatpush.msra.mxu0 %v418
    %424 = vmatpush.msra.mxu0 %v417
    %425 = vmatpush.msra.mxu0 %v416
    %426 = vmatpush.msra.mxu0 %v415
    %427 = vmatpush.msra.mxu0 %v414
    %428 = vmatpush.msra.mxu0 %v413
    %429 = vmatpush.msra.mxu0 %v412
    %430 = vmatpush.msra.mxu0 %v411
    %431 = vmatpush.msra.mxu0 %v410
    %432 = vmatpush.msra.mxu0 %v409
    %433 = vmatpush.msra.mxu0 %v408
    %434 = vmatpush.msra.mxu0 %v407
    %435 = vmatpush.msra.mxu0 %v406
    %436 = vmatpush.msra.mxu0 %v405
    %437 = vmatmul.f32.gmra.mxu0 %v402
    %v438 = vpop.f32.mrf.mxu0
    %v439 = vadd.f32 0.0, %v438
    %440 = vdwg.mxu0
    %s441 = scalar_lea.vmem %s5, 2
    %v442 = vld [vmem:[%s441] sm:$0x1]
    %v444 = vperm.slane %v442, 0
    %446 = vmatpush.msra.mxu0 0.0
    %447 = vmatpush.msra.mxu0 0.0
    %448 = vmatpush.msra.mxu0 0.0
    %449 = vmatpush.msra.mxu0 0.0
    %450 = vmatpush.msra.mxu0 0.0
    %451 = vmatpush.msra.mxu0 0.0
    %452 = vmatpush.msra.mxu0 0.0
    %453 = vmatpush.msra.mxu0 0.0
    %454 = vmatpush.msra.mxu0 0.0
    %455 = vmatpush.msra.mxu0 0.0
    %456 = vmatpush.msra.mxu0 0.0
    %457 = vmatpush.msra.mxu0 0.0
    %458 = vmatpush.msra.mxu0 0.0
    %459 = vmatpush.msra.mxu0 0.0
    %460 = vmatpush.msra.mxu0 0.0
    %461 = vmatpush.msra.mxu0 %v439
    %462 = vmatmul.f32.gmra.mxu0 %v382
    %v463 = vpop.f32.mrf.mxu0
    %v464 = vadd.f32 %v444, %v463
    %465 = vdwg.mxu0
    %s466 = scalar_lea.vmem [#allocation7], 16
    %467 = vst [vmem:[%s466] sm:$0xff] %v464
    %v468 = vadd.f32 %v197, %v330
    %469 = vst [vmem:[#allocation8] sm:$0xff] %v468
    %v470 = vld [vmem:[%s6] sm:$0xff]
    %v471 = vld [vmem:[%s6 + $0x8] sm:$0xff]
    %v472 = vld [vmem:[%s6 + $0x10] sm:$0xff]
    %v473 = vld [vmem:[%s6 + $0x18] sm:$0xff]
    %v474 = vld [vmem:[%s6 + $0x20] sm:$0xff]
    %v475 = vld [vmem:[%s6 + $0x28] sm:$0xff]
    %v476 = vld [vmem:[%s6 + $0x30] sm:$0xff]
    %v477 = vld [vmem:[%s6 + $0x38] sm:$0xff]
    %v478 = vld [vmem:[%s6 + $0x40] sm:$0xff]
    %v479 = vld [vmem:[%s6 + $0x48] sm:$0xff]
    %v480 = vld [vmem:[%s6 + $0x50] sm:$0xff]
    %v481 = vld [vmem:[%s6 + $0x58] sm:$0xff]
    %v482 = vld [vmem:[%s6 + $0x60] sm:$0xff]
    %v483 = vld [vmem:[%s6 + $0x68] sm:$0xff]
    %v484 = vld [vmem:[%s6 + $0x70] sm:$0xff]
    %v485 = vld [vmem:[%s6 + $0x78] sm:$0xff]
    %v486 = vld [vmem:[%s7] sm:$0x1]
    %v488 = vperm.slane %v486, 0
    %490 = vmatpush.msra.mxu0 %v485
    %491 = vmatpush.msra.mxu0 %v484
    %492 = vmatpush.msra.mxu0 %v483
    %493 = vmatpush.msra.mxu0 %v482
    %494 = vmatpush.msra.mxu0 %v481
    %495 = vmatpush.msra.mxu0 %v480
    %496 = vmatpush.msra.mxu0 %v479
    %497 = vmatpush.msra.mxu0 %v478
    %498 = vmatpush.msra.mxu0 %v477
    %499 = vmatpush.msra.mxu0 %v476
    %500 = vmatpush.msra.mxu0 %v475
    %501 = vmatpush.msra.mxu0 %v474
    %502 = vmatpush.msra.mxu0 %v473
    %503 = vmatpush.msra.mxu0 %v472
    %504 = vmatpush.msra.mxu0 %v471
    %505 = vmatpush.msra.mxu0 %v470
    %506 = vmatmul.f32.gmra.mxu0 %v468
    %v507 = vpop.f32.mrf.mxu0
    %v508 = vadd.f32 %v488, %v507
    %509 = vdwg.mxu0
    %vm510 = vcmask 130048
    %v511 = vsel %vm510, %v508, -inf
    %512 = vmax.xlane.f32.xlu0 %v511
    %v513 = vpop.xlane.xlu0 %512
    %v514 = vsub.f32 %v508, %v513
    %v515 = vmul.f32 %v514, 1.442695
    %v516 = vpow.pop %v515
    %v517 = vsel %vm510, %v516, 0.0
    %518 = vadd.xlane.f32.xlu0 %v517
    %v519 = vpop.xlane.xlu0 %518
    %v520 = vrcp.pop %v519
    %v521 = vmul.f32 %v516, %v520
    %522 = vst.msk [vmem:[#allocation10] sm:$0xff] %vm510, %v521
    // Predicated region
    $region42: #{net_forward.3} parent=1 // pred_check
      _
    $region43: #{net_forward.3} parent=1 // pred_check_branch
      %524 = sbr.rel (0) target = $region45
    $region44: #{net_forward.3} parent=1 // pred_region
      %526 = vsyncadd [#allocation4], 0
      %s527 = sshll.u32 [#allocation7], 4
      %s528 = int_to_ptr.vmem [resolvable:$true] %s527
      %s529 = sshll.u32 %s8, 4
      %s530 = int_to_ptr.hbm [resolvable:$true] %s529
      %535 = dma.vmem_to_hbm [thread:$0]  %s528, 384, %s530, [#allocation4], 128, 128, 8
    $region45: #{net_forward.3} parent=1 // pred_fallthru
      _
    // Predicated region
    $region46: #{net_forward.3} parent=1 // pred_check
      _
    $region47: #{net_forward.3} parent=1 // pred_check_branch
      %537 = sbr.rel (0) target = $region49
    $region48: #{net_forward.3} parent=1 // pred_region
      %539 = vsyncadd [#allocation9], 0
      %s541 = sshll.u32 [#allocation8], 4
      %s542 = int_to_ptr.vmem [resolvable:$true] %s541
      %s543 = sshll.u32 %s9, 4
      %s544 = int_to_ptr.hbm [resolvable:$true] %s543
      %546 = dma.vmem_to_hbm [thread:$0]  %s542, 128, %s544, [#allocation9]
    $region49: #{net_forward.3} parent=1 // pred_fallthru
      _
    // Predicated region
    $region50: #{net_forward.3} parent=1 // pred_check
      _
    $region51: #{net_forward.3} parent=1 // pred_check_branch
      %548 = sbr.rel (0) target = $region53
    $region52: #{net_forward.3} parent=1 // pred_region
      %550 = vsyncadd [#allocation9], 0
      %s552 = sshll.u32 [#allocation10], 4
      %s553 = int_to_ptr.vmem [resolvable:$true] %s552
      %s554 = sshll.u32 %s10, 4
      %s555 = int_to_ptr.hbm [resolvable:$true] %s554
      %557 = dma.vmem_to_hbm [thread:$0]  %s553, 128, %s555, [#allocation9]
    $region53: #{net_forward.3} parent=1 // pred_fallthru
      _
    // Predicated region
    $region54: #{net_forward.3} parent=1 // pred_check
      _
    $region55: #{net_forward.3} parent=1 // pred_check_branch
      %559 = sbr.rel (0) target = $region57
    $region56: #{net_forward.3} parent=1 // pred_region
      %561 = dma.done [#allocation4], 384
    $region57: #{net_forward.3} parent=1 // pred_fallthru
      _
    // Predicated region
    $region58: #{net_forward.3} parent=1 // pred_check
      _
    $region59: #{net_forward.3} parent=1 // pred_check_branch
      %563 = sbr.rel (0) target = $region61
    $region60: #{net_forward.3} parent=1 // pred_region
      %565 = dma.done [#allocation9], 128
    $region61: #{net_forward.3} parent=1 // pred_fallthru
      _
    // Predicated region
    $region62: #{net_forward.3} parent=1 // pred_check
      _
    $region63: #{net_forward.3} parent=1 // pred_check_branch
      %567 = sbr.rel (0) target = $region65
    $region64: #{net_forward.3} parent=1 // pred_region
      %569 = dma.done [#allocation9], 128
    $region65: #{net_forward.3} parent=1 // pred_fallthru
      _
    %570 = vsyncpa [#allocation3], 1
    %571 = vsyncpa [#allocation6], 1
    %572 = vsyncpa [#allocation4], 1
    %573 = vsyncpa [#allocation9], 1

</llo_original>
